<compile_context>
chip_gen: v7x
topology: tpu7x:2x2x1
jax: 0.10.0
libtpu: 0.0.40
codegen_flags: <defaults>
</compile_context>

<pallas_src>
import numpy as np
import jax
import jax.numpy as jnp
from jax.experimental import pallas as pl
from jax.experimental.pallas import tpu as pltpu

WINDOW_SIZE = 5


def window_model_kernel(words_ref, chars_ref, sel_ref, ww_ref, mc_ref,
                        w1p_ref, w2p_ref, bias_ref, out_ref):
    """One batch tile: one-hot gathers + conv-as-matmul + maxpool + MLP."""
    tb = words_ref.shape[0]
    W = words_ref.shape[1]            # word window size (5)
    L = chars_ref.shape[1]            # max word length (12)
    DWV = ww_ref.shape[0]             # W * word_vocab (500)
    DCN = mc_ref.shape[0]             # L * num_chars  (360)
    F = w1p_ref.shape[0]              # conv filters   (32)
    H = w1p_ref.shape[1]              # hidden         (64)
    TF = mc_ref.shape[1]              # T * F          (320)
    T = TF // F
    LBLP = out_ref.shape[1]           # lane-dense padded label width (128)

    words = words_ref[...]            # (tb, W) int32
    chars = chars_ref[...]            # (tb, L) int32

    # ---- word path: embedding gather fused as a single one-hot matmul -------
    # sel rows 0/1 over the first DWV lanes map: lane -> (window slot, vocab id)
    w_pos = sel_ref[0:1, :DWV]
    w_voc = sel_ref[1:2, :DWV]
    wsel = jnp.zeros((tb, DWV), jnp.int32)
    for w in range(W):                                    # static unroll, VPU selects
        wsel = jnp.where(w_pos == w, words[:, w:w + 1], wsel)
    oh_w = jnp.where(wsel == w_voc, 1.0, 0.0).astype(jnp.bfloat16)     # (tb, DWV)
    # ww = word_emb folded into linear1's word slice -> single 500-deep MXU push
    h = jnp.dot(oh_w, ww_ref[...], preferred_element_type=jnp.float32)  # (tb, H)

    # ---- char path: gather + .view bug + all conv taps as ONE matmul --------
    c_pos = sel_ref[0:1, DWV:DWV + DCN]
    c_chr = sel_ref[1:2, DWV:DWV + DCN]
    csel = jnp.zeros((tb, DCN), jnp.int32)
    for l in range(L):
        csel = jnp.where(c_pos == l, chars[:, l:l + 1], csel)
    oh_c = jnp.where(csel == c_chr, 1.0, 0.0).astype(jnp.bfloat16)     # (tb, DCN)
    conv = jnp.dot(oh_c, mc_ref[...], preferred_element_type=jnp.float32)  # (tb, T*F)

    # torch.max(conv_out, dim=-1): unrolled elementwise max over the T lane
    # slices (stays on the VPU).  Conv bias is T-invariant -> added after max.
    pooled = conv[:, 0:F]
    for t in range(1, T):
        pooled = jnp.maximum(pooled, conv[:, t * F:(t + 1) * F])
    pooled = pooled + bias_ref[0:1, :F]                                # (tb, F)

    # ---- linear1 (+bias) -> tanh -> linear2 (+bias), f32 elementwise --------
    h = h + jnp.dot(pooled.astype(jnp.bfloat16), w1p_ref[...],
                    preferred_element_type=jnp.float32)
    h = jnp.tanh(h + bias_ref[1:2, :H])
    # Dropout(p=0.5) is identity in eval mode.
    out_ref[...] = (jnp.dot(h.astype(jnp.bfloat16), w2p_ref[...],
                            preferred_element_type=jnp.float32)
                    + bias_ref[2:3, :LBLP])


def _round_up(x, m):
    return ((x + m - 1) // m) * m


def window_model_forward(x_words_idx, x_chars_idx, params, *, tb=None):
    """params = (word_emb, char_emb, conv_w, conv_b, w1, b1, w2, b2)."""
    word_emb, char_emb, conv_w, conv_b, w1, b1, w2, b2 = params
    B, W = x_words_idx.shape
    L = x_chars_idx.shape[1]
    V, E = word_emb.shape             # word vocab, word embedding dim (50)
    NC, Ce = char_emb.shape           # char vocab, char embedding dim
    F, _, K = conv_w.shape
    T = L - K + 1
    assert T > 0, "word length must be >= conv kernel size"
    H = w1.shape[0]
    LBL = w2.shape[0]
    DW = W * E                        # 250 word features feeding linear1
    LANE = 128
    LBLP = _round_up(LBL, LANE)       # lane-dense output width
    BW = max(LBLP, _round_up(max(F, H), LANE))
    f32 = jnp.float32
    bf16 = jnp.bfloat16

    # ---------- one-time weight prep (glue; exact constant folding) ----------
    # Structure tensor of the valid conv applied to the .view(B, Ce, L) bug
    # layout: S[c, k, p, t] = 1 iff p == c*L + t + k, where p indexes the
    # row-major (char_pos, emb_dim) flattening of the gathered char embeddings.
    S = np.zeros((Ce, K, L * Ce, T), np.float32)
    for c in range(Ce):
        for k in range(K):
            for t in range(T):
                S[c, k, c * L + t + k, t] = 1.0
    M = jnp.einsum('fck,ckpt->ptf', conv_w.astype(f32), jnp.asarray(S))  # (L*Ce,T,F)
    M = M.reshape(L, Ce, T, F)
    # Fold the char embedding table in -> (L*NC, T*F) conv-lowering matrix.
    mc = jnp.einsum('nc,lctf->lntf', char_emb.astype(f32), M).reshape(L * NC, T * F)

    # Fold the word embedding table into linear1's word slice -> (W*V, H).
    ww = jnp.einsum('ve,hwe->wvh', word_emb.astype(f32),
                    w1[:, :DW].reshape(H, W, E)).reshape(W * V, H)
    w1p = w1[:, DW:].T                                                   # (F, H)
    w2p = jnp.zeros((H, LBLP), f32).at[:, :LBL].set(w2.T)                # lane-dense

    # Packed biases: row0 = conv_b, row1 = b1, row2 = b2 (padded to lanes).
    biases = (jnp.zeros((3, BW), f32)
              .at[0, :F].set(conv_b).at[1, :H].set(b1).at[2, :LBL].set(b2))

    # lane -> (position, id) selector tables for the in-kernel one-hot gathers.
    DWV, DCN = W * V, L * NC
    sel = np.zeros((2, DWV + DCN), np.int32)
    sel[0, :DWV] = np.arange(DWV) // V
    sel[1, :DWV] = np.arange(DWV) % V
    sel[0, DWV:] = np.arange(DCN) // NC
    sel[1, DWV:] = np.arange(DCN) % NC
    sel = jnp.asarray(sel)

    # ---------- batch tiling ---------------------------------------------------
    if tb is None:
        tb = min(256, _round_up(B, 8))   # sized well under v7x's 64 MiB VMEM
    tb = max(8, _round_up(tb, 8))
    Bp = _round_up(B, tb)
    words = jnp.zeros((Bp, W), jnp.int32).at[:B].set(x_words_idx.astype(jnp.int32))
    chars = jnp.zeros((Bp, L), jnp.int32).at[:B].set(x_chars_idx.astype(jnp.int32))
    grid = (Bp // tb,)

    flops = 2 * Bp * (DWV * H + DCN * T * F + F * H + H * LBLP)
    bytes_accessed = int(words.size * 4 + chars.size * 4 + sel.size * 4
                         + ww.size * 2 + mc.size * 2 + w1p.size * 2
                         + w2p.size * 2 + biases.size * 4 + Bp * LBLP * 4)

    def resident(a):
        return pl.BlockSpec(a.shape, lambda i: (0, 0))   # VMEM-resident across grid

    out = pl.pallas_call(
        window_model_kernel,
        out_shape=jax.ShapeDtypeStruct((Bp, LBLP), f32),
        grid=grid,
        in_specs=[
            pl.BlockSpec((tb, W), lambda i: (i, 0)),     # word indices (batch-blocked)
            pl.BlockSpec((tb, L), lambda i: (i, 0)),     # char indices (batch-blocked)
            resident(sel),                               # one-hot selector lanes
            resident(ww), resident(mc),                  # folded gather / conv weights
            resident(w1p), resident(w2p),                # MLP weights (w2 lane-padded)
            resident(biases),                            # packed conv_b | b1 | b2
        ],
        out_specs=pl.BlockSpec((tb, LBLP), lambda i: (i, 0)),
        compiler_params=pltpu.CompilerParams(
            dimension_semantics=("parallel",),           # shard batch tiles on v7x TCs
            vmem_limit_bytes=32 * 1024 * 1024),
        cost_estimate=pl.CostEstimate(flops=flops, transcendentals=Bp * H,
                                      bytes_accessed=bytes_accessed),
    )(words, chars, sel,
      ww.astype(bf16), mc.astype(bf16), w1p.astype(bf16), w2p.astype(bf16),
      biases)
    return out[:B, :LBL]


def reference_forward(x_words_idx, x_chars_idx, params):
    """Pure-JAX f32 mirror of the PyTorch forward (eval mode)."""
    (word_emb, char_emb, conv_w, conv_b, w1, b1, w2, b2) = params
    B = x_words_idx.shape[0]
    Ce = char_emb.shape[1]
    L = x_chars_idx.shape[1]
    F, _, K = conv_w.shape
    T = L - K + 1

    xw = word_emb[x_words_idx].reshape(B, -1)
    xc = char_emb[x_chars_idx].reshape(B, Ce, L)          # .view bug (memory reinterpret)
    conv = sum(jnp.einsum('bct,fc->bft', xc[:, :, k:k + T], conv_w[:, :, k])
               for k in range(K)) + conv_b[None, :, None]
    pooled = conv.max(-1)
    feat = jnp.concatenate([xw, pooled], axis=-1)
    h = jnp.tanh(feat @ w1.T + b1)
    return h @ w2.T + b2


if __name__ == "__main__":
    B = 40             # batch of word windows (exercises a 3-step batch grid)
    VOCAB = 100
    WORD_EMB = 50      # 50 * WINDOW_SIZE = 250 (required by linear1 in_features)
    NUM_CHARS = 30
    CHAR_EMB = 16      # conv1d in_channels
    NUM_FILTERS = 32
    KSIZE = 3
    MAX_WORD_LEN = 12  # char sequence length L
    HIDDEN = 64
    LABELS = 5

    key = jax.random.PRNGKey(0)
    ks = jax.random.split(key, 10)
    word_emb = jax.random.normal(ks[0], (VOCAB, WORD_EMB), jnp.float32) * 0.1
    char_emb = jax.random.normal(ks[1], (NUM_CHARS, CHAR_EMB), jnp.float32) * 0.1
    conv_w = jax.random.normal(ks[2], (NUM_FILTERS, CHAR_EMB, KSIZE), jnp.float32) * 0.1
    conv_b = jax.random.normal(ks[3], (NUM_FILTERS,), jnp.float32) * 0.1
    w1 = jax.random.normal(ks[4], (HIDDEN, NUM_FILTERS + WORD_EMB * WINDOW_SIZE),
                           jnp.float32) * 0.1
    b1 = jax.random.normal(ks[5], (HIDDEN,), jnp.float32) * 0.1
    w2 = jax.random.normal(ks[6], (LABELS, HIDDEN), jnp.float32) * 0.1
    b2 = jax.random.normal(ks[7], (LABELS,), jnp.float32) * 0.1
    params = (word_emb, char_emb, conv_w, conv_b, w1, b1, w2, b2)

    x_words = jax.random.randint(ks[8], (B, WINDOW_SIZE), 0, VOCAB, jnp.int32)
    x_chars = jax.random.randint(ks[9], (B, MAX_WORD_LEN), 0, NUM_CHARS, jnp.int32)

    out = window_model_forward(x_words, x_chars, params, tb=16)   # grid = (3,)
    out = jax.block_until_ready(out)

    ref = reference_forward(x_words, x_chars, params)
    assert out.shape == (B, LABELS)
    # bf16 MXU operands (f32 accumulation): compare to the f32 reference with a
    # correspondingly loosened tolerance.
    assert jnp.allclose(out, ref, rtol=2e-2, atol=2e-2), "mismatch vs reference"
    print("KERNEL_OK")
</pallas_src>

<mosaic_0001>
module attributes {stable_mosaic.version = 11 : i64} {
  func.func @window_model_kernel(%arg0: i32, %arg1: memref<16x5xi32, #tpu.memory_space<vmem>>, %arg2: memref<16x12xi32, #tpu.memory_space<vmem>>, %arg3: memref<2x860xi32, #tpu.memory_space<vmem>>, %arg4: memref<500x64xbf16, #tpu.memory_space<vmem>>, %arg5: memref<360x320xbf16, #tpu.memory_space<vmem>>, %arg6: memref<32x64xbf16, #tpu.memory_space<vmem>>, %arg7: memref<64x128xbf16, #tpu.memory_space<vmem>>, %arg8: memref<3x128xf32, #tpu.memory_space<vmem>>, %arg9: memref<16x128xf32, #tpu.memory_space<vmem>>) attributes {dimension_semantics = [#tpu.dimension_semantics<parallel>], iteration_bounds = array<i64: 3>, scalar_prefetch = 0 : i64, scratch_operands = 0 : i64, tpu.core_type = #tpu.core_type<tc>, window_params = [{transform_indices = @transform_0, window_bounds = array<i64: 16, 5>}, {transform_indices = @transform_1, window_bounds = array<i64: 16, 12>}, {pipeline_mode = #tpu.pipeline_mode<synchronous>, transform_indices = @transform_2, window_bounds = array<i64: 2, 860>}, {pipeline_mode = #tpu.pipeline_mode<synchronous>, transform_indices = @transform_3, window_bounds = array<i64: 500, 64>}, {pipeline_mode = #tpu.pipeline_mode<synchronous>, transform_indices = @transform_4, window_bounds = array<i64: 360, 320>}, {pipeline_mode = #tpu.pipeline_mode<synchronous>, transform_indices = @transform_5, window_bounds = array<i64: 32, 64>}, {pipeline_mode = #tpu.pipeline_mode<synchronous>, transform_indices = @transform_6, window_bounds = array<i64: 64, 128>}, {pipeline_mode = #tpu.pipeline_mode<synchronous>, transform_indices = @transform_7, window_bounds = array<i64: 3, 128>}, {transform_indices = @transform_8, window_bounds = array<i64: 16, 128>}]} {
    %c0 = arith.constant 0 : index
    %c0_0 = arith.constant 0 : index
    %0 = vector.load %arg1[%c0, %c0_0] : memref<16x5xi32, #tpu.memory_space<vmem>>, vector<16x5xi32>
    %c0_1 = arith.constant 0 : index
    %c0_2 = arith.constant 0 : index
    %1 = vector.load %arg2[%c0_1, %c0_2] : memref<16x12xi32, #tpu.memory_space<vmem>>, vector<16x12xi32>
    %c0_3 = arith.constant 0 : index
    %c0_4 = arith.constant 0 : index
    %2 = vector.load %arg3[%c0_3, %c0_4] : memref<2x860xi32, #tpu.memory_space<vmem>>, vector<1x500xi32>
    %c1 = arith.constant 1 : index
    %c0_5 = arith.constant 0 : index
    %3 = vector.load %arg3[%c1, %c0_5] : memref<2x860xi32, #tpu.memory_space<vmem>>, vector<1x500xi32>
    %c0_i32 = arith.constant 0 : i32
    %4 = vector.broadcast %c0_i32 : i32 to vector<16x500xi32>
    %c0_i32_6 = arith.constant 0 : i32
    %5 = vector.broadcast %c0_i32_6 : i32 to vector<1x500xi32>
    %6 = arith.cmpi eq, %2, %5 : vector<1x500xi32>
    %7 = vector.extract_strided_slice %0 {offsets = [0, 0], sizes = [16, 1], strides = [1, 1]} : vector<16x5xi32> to vector<16x1xi32>
    %8 = vector.shape_cast %6 : vector<1x500xi1> to vector<1x500xi1>
    %9 = vector.broadcast %8 : vector<1x500xi1> to vector<16x500xi1>
    %10 = vector.shape_cast %7 : vector<16x1xi32> to vector<16x1xi32>
    %11 = vector.broadcast %10 : vector<16x1xi32> to vector<16x500xi32>
    %12 = arith.select %9, %11, %4 : vector<16x500xi1>, vector<16x500xi32>
    %c1_i32 = arith.constant 1 : i32
    %13 = vector.broadcast %c1_i32 : i32 to vector<1x500xi32>
    %14 = arith.cmpi eq, %2, %13 : vector<1x500xi32>
    %15 = vector.extract_strided_slice %0 {offsets = [0, 1], sizes = [16, 1], strides = [1, 1]} : vector<16x5xi32> to vector<16x1xi32>
    %16 = vector.shape_cast %14 : vector<1x500xi1> to vector<1x500xi1>
    %17 = vector.broadcast %16 : vector<1x500xi1> to vector<16x500xi1>
    %18 = vector.shape_cast %15 : vector<16x1xi32> to vector<16x1xi32>
    %19 = vector.broadcast %18 : vector<16x1xi32> to vector<16x500xi32>
    %20 = arith.select %17, %19, %12 : vector<16x500xi1>, vector<16x500xi32>
    %c2_i32 = arith.constant 2 : i32
    %21 = vector.broadcast %c2_i32 : i32 to vector<1x500xi32>
    %22 = arith.cmpi eq, %2, %21 : vector<1x500xi32>
    %23 = vector.extract_strided_slice %0 {offsets = [0, 2], sizes = [16, 1], strides = [1, 1]} : vector<16x5xi32> to vector<16x1xi32>
    %24 = vector.shape_cast %22 : vector<1x500xi1> to vector<1x500xi1>
    %25 = vector.broadcast %24 : vector<1x500xi1> to vector<16x500xi1>
    %26 = vector.shape_cast %23 : vector<16x1xi32> to vector<16x1xi32>
    %27 = vector.broadcast %26 : vector<16x1xi32> to vector<16x500xi32>
    %28 = arith.select %25, %27, %20 : vector<16x500xi1>, vector<16x500xi32>
    %c3_i32 = arith.constant 3 : i32
    %29 = vector.broadcast %c3_i32 : i32 to vector<1x500xi32>
    %30 = arith.cmpi eq, %2, %29 : vector<1x500xi32>
    %31 = vector.extract_strided_slice %0 {offsets = [0, 3], sizes = [16, 1], strides = [1, 1]} : vector<16x5xi32> to vector<16x1xi32>
    %32 = vector.shape_cast %30 : vector<1x500xi1> to vector<1x500xi1>
    %33 = vector.broadcast %32 : vector<1x500xi1> to vector<16x500xi1>
    %34 = vector.shape_cast %31 : vector<16x1xi32> to vector<16x1xi32>
    %35 = vector.broadcast %34 : vector<16x1xi32> to vector<16x500xi32>
    %36 = arith.select %33, %35, %28 : vector<16x500xi1>, vector<16x500xi32>
    %c4_i32 = arith.constant 4 : i32
    %37 = vector.broadcast %c4_i32 : i32 to vector<1x500xi32>
    %38 = arith.cmpi eq, %2, %37 : vector<1x500xi32>
    %39 = vector.extract_strided_slice %0 {offsets = [0, 4], sizes = [16, 1], strides = [1, 1]} : vector<16x5xi32> to vector<16x1xi32>
    %40 = vector.shape_cast %38 : vector<1x500xi1> to vector<1x500xi1>
    %41 = vector.broadcast %40 : vector<1x500xi1> to vector<16x500xi1>
    %42 = vector.shape_cast %39 : vector<16x1xi32> to vector<16x1xi32>
    %43 = vector.broadcast %42 : vector<16x1xi32> to vector<16x500xi32>
    %44 = arith.select %41, %43, %36 : vector<16x500xi1>, vector<16x500xi32>
    %45 = vector.broadcast %3 : vector<1x500xi32> to vector<16x500xi32>
    %46 = arith.cmpi eq, %44, %45 : vector<16x500xi32>
    %cst = arith.constant 1.000000e+00 : f32
    %cst_7 = arith.constant 0.000000e+00 : f32
    %47 = vector.broadcast %cst : f32 to vector<16x500xf32>
    %48 = vector.broadcast %cst_7 : f32 to vector<16x500xf32>
    %49 = arith.select %46, %47, %48 : vector<16x500xi1>, vector<16x500xf32>
    %50 = arith.truncf %49 : vector<16x500xf32> to vector<16x500xbf16>
    %c0_8 = arith.constant 0 : index
    %c0_9 = arith.constant 0 : index
    %51 = vector.load %arg4[%c0_8, %c0_9] : memref<500x64xbf16, #tpu.memory_space<vmem>>, vector<500x64xbf16>
    %cst_10 = arith.constant dense<0.000000e+00> : vector<16x64xf32>
    %52 = tpu.matmul %50, %51, %cst_10 {dimension_numbers = #tpu.dot_dimension_numbers<[1], [0], [0], [1], [0, 0, 1, 1], [], []>} : vector<16x500xbf16>, vector<500x64xbf16>, vector<16x64xf32> -> vector<16x64xf32>
    %c0_11 = arith.constant 0 : index
    %c500 = arith.constant 500 : index
    %53 = vector.load %arg3[%c0_11, %c500] : memref<2x860xi32, #tpu.memory_space<vmem>>, vector<1x360xi32>
    %c1_12 = arith.constant 1 : index
    %c500_13 = arith.constant 500 : index
    %54 = vector.load %arg3[%c1_12, %c500_13] : memref<2x860xi32, #tpu.memory_space<vmem>>, vector<1x360xi32>
    %c0_i32_14 = arith.constant 0 : i32
    %55 = vector.broadcast %c0_i32_14 : i32 to vector<16x360xi32>
    %c0_i32_15 = arith.constant 0 : i32
    %56 = vector.broadcast %c0_i32_15 : i32 to vector<1x360xi32>
    %57 = arith.cmpi eq, %53, %56 : vector<1x360xi32>
    %58 = vector.extract_strided_slice %1 {offsets = [0, 0], sizes = [16, 1], strides = [1, 1]} : vector<16x12xi32> to vector<16x1xi32>
    %59 = vector.shape_cast %57 : vector<1x360xi1> to vector<1x360xi1>
    %60 = vector.broadcast %59 : vector<1x360xi1> to vector<16x360xi1>
    %61 = vector.shape_cast %58 : vector<16x1xi32> to vector<16x1xi32>
    %62 = vector.broadcast %61 : vector<16x1xi32> to vector<16x360xi32>
    %63 = arith.select %60, %62, %55 : vector<16x360xi1>, vector<16x360xi32>
    %c1_i32_16 = arith.constant 1 : i32
    %64 = vector.broadcast %c1_i32_16 : i32 to vector<1x360xi32>
    %65 = arith.cmpi eq, %53, %64 : vector<1x360xi32>
    %66 = vector.extract_strided_slice %1 {offsets = [0, 1], sizes = [16, 1], strides = [1, 1]} : vector<16x12xi32> to vector<16x1xi32>
    %67 = vector.shape_cast %65 : vector<1x360xi1> to vector<1x360xi1>
    %68 = vector.broadcast %67 : vector<1x360xi1> to vector<16x360xi1>
    %69 = vector.shape_cast %66 : vector<16x1xi32> to vector<16x1xi32>
    %70 = vector.broadcast %69 : vector<16x1xi32> to vector<16x360xi32>
    %71 = arith.select %68, %70, %63 : vector<16x360xi1>, vector<16x360xi32>
    %c2_i32_17 = arith.constant 2 : i32
    %72 = vector.broadcast %c2_i32_17 : i32 to vector<1x360xi32>
    %73 = arith.cmpi eq, %53, %72 : vector<1x360xi32>
    %74 = vector.extract_strided_slice %1 {offsets = [0, 2], sizes = [16, 1], strides = [1, 1]} : vector<16x12xi32> to vector<16x1xi32>
    %75 = vector.shape_cast %73 : vector<1x360xi1> to vector<1x360xi1>
    %76 = vector.broadcast %75 : vector<1x360xi1> to vector<16x360xi1>
    %77 = vector.shape_cast %74 : vector<16x1xi32> to vector<16x1xi32>
    %78 = vector.broadcast %77 : vector<16x1xi32> to vector<16x360xi32>
    %79 = arith.select %76, %78, %71 : vector<16x360xi1>, vector<16x360xi32>
    %c3_i32_18 = arith.constant 3 : i32
    %80 = vector.broadcast %c3_i32_18 : i32 to vector<1x360xi32>
    %81 = arith.cmpi eq, %53, %80 : vector<1x360xi32>
    %82 = vector.extract_strided_slice %1 {offsets = [0, 3], sizes = [16, 1], strides = [1, 1]} : vector<16x12xi32> to vector<16x1xi32>
    %83 = vector.shape_cast %81 : vector<1x360xi1> to vector<1x360xi1>
    %84 = vector.broadcast %83 : vector<1x360xi1> to vector<16x360xi1>
    %85 = vector.shape_cast %82 : vector<16x1xi32> to vector<16x1xi32>
    %86 = vector.broadcast %85 : vector<16x1xi32> to vector<16x360xi32>
    %87 = arith.select %84, %86, %79 : vector<16x360xi1>, vector<16x360xi32>
    %c4_i32_19 = arith.constant 4 : i32
    %88 = vector.broadcast %c4_i32_19 : i32 to vector<1x360xi32>
    %89 = arith.cmpi eq, %53, %88 : vector<1x360xi32>
    %90 = vector.extract_strided_slice %1 {offsets = [0, 4], sizes = [16, 1], strides = [1, 1]} : vector<16x12xi32> to vector<16x1xi32>
    %91 = vector.shape_cast %89 : vector<1x360xi1> to vector<1x360xi1>
    %92 = vector.broadcast %91 : vector<1x360xi1> to vector<16x360xi1>
    %93 = vector.shape_cast %90 : vector<16x1xi32> to vector<16x1xi32>
    %94 = vector.broadcast %93 : vector<16x1xi32> to vector<16x360xi32>
    %95 = arith.select %92, %94, %87 : vector<16x360xi1>, vector<16x360xi32>
    %c5_i32 = arith.constant 5 : i32
    %96 = vector.broadcast %c5_i32 : i32 to vector<1x360xi32>
    %97 = arith.cmpi eq, %53, %96 : vector<1x360xi32>
    %98 = vector.extract_strided_slice %1 {offsets = [0, 5], sizes = [16, 1], strides = [1, 1]} : vector<16x12xi32> to vector<16x1xi32>
    %99 = vector.shape_cast %97 : vector<1x360xi1> to vector<1x360xi1>
    %100 = vector.broadcast %99 : vector<1x360xi1> to vector<16x360xi1>
    %101 = vector.shape_cast %98 : vector<16x1xi32> to vector<16x1xi32>
    %102 = vector.broadcast %101 : vector<16x1xi32> to vector<16x360xi32>
    %103 = arith.select %100, %102, %95 : vector<16x360xi1>, vector<16x360xi32>
    %c6_i32 = arith.constant 6 : i32
    %104 = vector.broadcast %c6_i32 : i32 to vector<1x360xi32>
    %105 = arith.cmpi eq, %53, %104 : vector<1x360xi32>
    %106 = vector.extract_strided_slice %1 {offsets = [0, 6], sizes = [16, 1], strides = [1, 1]} : vector<16x12xi32> to vector<16x1xi32>
    %107 = vector.shape_cast %105 : vector<1x360xi1> to vector<1x360xi1>
    %108 = vector.broadcast %107 : vector<1x360xi1> to vector<16x360xi1>
    %109 = vector.shape_cast %106 : vector<16x1xi32> to vector<16x1xi32>
    %110 = vector.broadcast %109 : vector<16x1xi32> to vector<16x360xi32>
    %111 = arith.select %108, %110, %103 : vector<16x360xi1>, vector<16x360xi32>
    %c7_i32 = arith.constant 7 : i32
    %112 = vector.broadcast %c7_i32 : i32 to vector<1x360xi32>
    %113 = arith.cmpi eq, %53, %112 : vector<1x360xi32>
    %114 = vector.extract_strided_slice %1 {offsets = [0, 7], sizes = [16, 1], strides = [1, 1]} : vector<16x12xi32> to vector<16x1xi32>
    %115 = vector.shape_cast %113 : vector<1x360xi1> to vector<1x360xi1>
    %116 = vector.broadcast %115 : vector<1x360xi1> to vector<16x360xi1>
    %117 = vector.shape_cast %114 : vector<16x1xi32> to vector<16x1xi32>
    %118 = vector.broadcast %117 : vector<16x1xi32> to vector<16x360xi32>
    %119 = arith.select %116, %118, %111 : vector<16x360xi1>, vector<16x360xi32>
    %c8_i32 = arith.constant 8 : i32
    %120 = vector.broadcast %c8_i32 : i32 to vector<1x360xi32>
    %121 = arith.cmpi eq, %53, %120 : vector<1x360xi32>
    %122 = vector.extract_strided_slice %1 {offsets = [0, 8], sizes = [16, 1], strides = [1, 1]} : vector<16x12xi32> to vector<16x1xi32>
    %123 = vector.shape_cast %121 : vector<1x360xi1> to vector<1x360xi1>
    %124 = vector.broadcast %123 : vector<1x360xi1> to vector<16x360xi1>
    %125 = vector.shape_cast %122 : vector<16x1xi32> to vector<16x1xi32>
    %126 = vector.broadcast %125 : vector<16x1xi32> to vector<16x360xi32>
    %127 = arith.select %124, %126, %119 : vector<16x360xi1>, vector<16x360xi32>
    %c9_i32 = arith.constant 9 : i32
    %128 = vector.broadcast %c9_i32 : i32 to vector<1x360xi32>
    %129 = arith.cmpi eq, %53, %128 : vector<1x360xi32>
    %130 = vector.extract_strided_slice %1 {offsets = [0, 9], sizes = [16, 1], strides = [1, 1]} : vector<16x12xi32> to vector<16x1xi32>
    %131 = vector.shape_cast %129 : vector<1x360xi1> to vector<1x360xi1>
    %132 = vector.broadcast %131 : vector<1x360xi1> to vector<16x360xi1>
    %133 = vector.shape_cast %130 : vector<16x1xi32> to vector<16x1xi32>
    %134 = vector.broadcast %133 : vector<16x1xi32> to vector<16x360xi32>
    %135 = arith.select %132, %134, %127 : vector<16x360xi1>, vector<16x360xi32>
    %c10_i32 = arith.constant 10 : i32
    %136 = vector.broadcast %c10_i32 : i32 to vector<1x360xi32>
    %137 = arith.cmpi eq, %53, %136 : vector<1x360xi32>
    %138 = vector.extract_strided_slice %1 {offsets = [0, 10], sizes = [16, 1], strides = [1, 1]} : vector<16x12xi32> to vector<16x1xi32>
    %139 = vector.shape_cast %137 : vector<1x360xi1> to vector<1x360xi1>
    %140 = vector.broadcast %139 : vector<1x360xi1> to vector<16x360xi1>
    %141 = vector.shape_cast %138 : vector<16x1xi32> to vector<16x1xi32>
    %142 = vector.broadcast %141 : vector<16x1xi32> to vector<16x360xi32>
    %143 = arith.select %140, %142, %135 : vector<16x360xi1>, vector<16x360xi32>
    %c11_i32 = arith.constant 11 : i32
    %144 = vector.broadcast %c11_i32 : i32 to vector<1x360xi32>
    %145 = arith.cmpi eq, %53, %144 : vector<1x360xi32>
    %146 = vector.extract_strided_slice %1 {offsets = [0, 11], sizes = [16, 1], strides = [1, 1]} : vector<16x12xi32> to vector<16x1xi32>
    %147 = vector.shape_cast %145 : vector<1x360xi1> to vector<1x360xi1>
    %148 = vector.broadcast %147 : vector<1x360xi1> to vector<16x360xi1>
    %149 = vector.shape_cast %146 : vector<16x1xi32> to vector<16x1xi32>
    %150 = vector.broadcast %149 : vector<16x1xi32> to vector<16x360xi32>
    %151 = arith.select %148, %150, %143 : vector<16x360xi1>, vector<16x360xi32>
    %152 = vector.broadcast %54 : vector<1x360xi32> to vector<16x360xi32>
    %153 = arith.cmpi eq, %151, %152 : vector<16x360xi32>
    %cst_20 = arith.constant 1.000000e+00 : f32
    %cst_21 = arith.constant 0.000000e+00 : f32
    %154 = vector.broadcast %cst_20 : f32 to vector<16x360xf32>
    %155 = vector.broadcast %cst_21 : f32 to vector<16x360xf32>
    %156 = arith.select %153, %154, %155 : vector<16x360xi1>, vector<16x360xf32>
    %157 = arith.truncf %156 : vector<16x360xf32> to vector<16x360xbf16>
    %c0_22 = arith.constant 0 : index
    %c0_23 = arith.constant 0 : index
    %158 = vector.load %arg5[%c0_22, %c0_23] : memref<360x320xbf16, #tpu.memory_space<vmem>>, vector<360x320xbf16>
    %cst_24 = arith.constant dense<0.000000e+00> : vector<16x320xf32>
    %159 = tpu.matmul %157, %158, %cst_24 {dimension_numbers = #tpu.dot_dimension_numbers<[1], [0], [0], [1], [0, 0, 1, 1], [], []>} : vector<16x360xbf16>, vector<360x320xbf16>, vector<16x320xf32> -> vector<16x320xf32>
    %160 = vector.extract_strided_slice %159 {offsets = [0, 0], sizes = [16, 32], strides = [1, 1]} : vector<16x320xf32> to vector<16x32xf32>
    %161 = vector.extract_strided_slice %159 {offsets = [0, 32], sizes = [16, 32], strides = [1, 1]} : vector<16x320xf32> to vector<16x32xf32>
    %162 = arith.maximumf %160, %161 : vector<16x32xf32>
    %163 = vector.extract_strided_slice %159 {offsets = [0, 64], sizes = [16, 32], strides = [1, 1]} : vector<16x320xf32> to vector<16x32xf32>
    %164 = arith.maximumf %162, %163 : vector<16x32xf32>
    %165 = vector.extract_strided_slice %159 {offsets = [0, 96], sizes = [16, 32], strides = [1, 1]} : vector<16x320xf32> to vector<16x32xf32>
    %166 = arith.maximumf %164, %165 : vector<16x32xf32>
    %167 = vector.extract_strided_slice %159 {offsets = [0, 128], sizes = [16, 32], strides = [1, 1]} : vector<16x320xf32> to vector<16x32xf32>
    %168 = arith.maximumf %166, %167 : vector<16x32xf32>
    %169 = vector.extract_strided_slice %159 {offsets = [0, 160], sizes = [16, 32], strides = [1, 1]} : vector<16x320xf32> to vector<16x32xf32>
    %170 = arith.maximumf %168, %169 : vector<16x32xf32>
    %171 = vector.extract_strided_slice %159 {offsets = [0, 192], sizes = [16, 32], strides = [1, 1]} : vector<16x320xf32> to vector<16x32xf32>
    %172 = arith.maximumf %170, %171 : vector<16x32xf32>
    %173 = vector.extract_strided_slice %159 {offsets = [0, 224], sizes = [16, 32], strides = [1, 1]} : vector<16x320xf32> to vector<16x32xf32>
    %174 = arith.maximumf %172, %173 : vector<16x32xf32>
    %175 = vector.extract_strided_slice %159 {offsets = [0, 256], sizes = [16, 32], strides = [1, 1]} : vector<16x320xf32> to vector<16x32xf32>
    %176 = arith.maximumf %174, %175 : vector<16x32xf32>
    %177 = vector.extract_strided_slice %159 {offsets = [0, 288], sizes = [16, 32], strides = [1, 1]} : vector<16x320xf32> to vector<16x32xf32>
    %178 = arith.maximumf %176, %177 : vector<16x32xf32>
    %c0_25 = arith.constant 0 : index
    %c0_26 = arith.constant 0 : index
    %179 = vector.load %arg8[%c0_25, %c0_26] : memref<3x128xf32, #tpu.memory_space<vmem>>, vector<1x32xf32>
    %180 = vector.broadcast %179 : vector<1x32xf32> to vector<16x32xf32>
    %181 = arith.addf %178, %180 : vector<16x32xf32>
    %182 = arith.truncf %181 : vector<16x32xf32> to vector<16x32xbf16>
    %c0_27 = arith.constant 0 : index
    %c0_28 = arith.constant 0 : index
    %183 = vector.load %arg6[%c0_27, %c0_28] : memref<32x64xbf16, #tpu.memory_space<vmem>>, vector<32x64xbf16>
    %cst_29 = arith.constant dense<0.000000e+00> : vector<16x64xf32>
    %184 = tpu.matmul %182, %183, %cst_29 {dimension_numbers = #tpu.dot_dimension_numbers<[1], [0], [0], [1], [0, 0, 1, 1], [], []>} : vector<16x32xbf16>, vector<32x64xbf16>, vector<16x64xf32> -> vector<16x64xf32>
    %185 = arith.addf %52, %184 : vector<16x64xf32>
    %c1_30 = arith.constant 1 : index
    %c0_31 = arith.constant 0 : index
    %186 = vector.load %arg8[%c1_30, %c0_31] : memref<3x128xf32, #tpu.memory_space<vmem>>, vector<1x64xf32>
    %187 = vector.broadcast %186 : vector<1x64xf32> to vector<16x64xf32>
    %188 = arith.addf %185, %187 : vector<16x64xf32>
    %189 = math.tanh %188 : vector<16x64xf32>
    %190 = arith.truncf %189 : vector<16x64xf32> to vector<16x64xbf16>
    %c0_32 = arith.constant 0 : index
    %c0_33 = arith.constant 0 : index
    %191 = vector.load %arg7[%c0_32, %c0_33] : memref<64x128xbf16, #tpu.memory_space<vmem>>, vector<64x128xbf16>
    %cst_34 = arith.constant dense<0.000000e+00> : vector<16x128xf32>
    %192 = tpu.matmul %190, %191, %cst_34 {dimension_numbers = #tpu.dot_dimension_numbers<[1], [0], [0], [1], [0, 0, 1, 1], [], []>} : vector<16x64xbf16>, vector<64x128xbf16>, vector<16x128xf32> -> vector<16x128xf32>
    %c2 = arith.constant 2 : index
    %c0_35 = arith.constant 0 : index
    %193 = vector.load %arg8[%c2, %c0_35] : memref<3x128xf32, #tpu.memory_space<vmem>>, vector<1x128xf32>
    %194 = vector.broadcast %193 : vector<1x128xf32> to vector<16x128xf32>
    %195 = arith.addf %192, %194 : vector<16x128xf32>
    %c0_36 = arith.constant 0 : index
    %c0_37 = arith.constant 0 : index
    %196 = vector.load %arg9[%c0_36, %c0_37] : memref<16x128xf32, #tpu.memory_space<vmem>>, vector<16x128xf32>
    tpu.vector_store %arg9[%c0_36, %c0_37], %195 {strides = array<i32>} : memref<16x128xf32, #tpu.memory_space<vmem>>, vector<16x128xf32>,
    return
  }
  func.func @transform_0(%arg0: i32) -> (i32, i32) {
    %c0_i32 = arith.constant 0 : i32
    %c0_i32_0 = arith.constant 0 : i32
    return %arg0, %c0_i32 : i32, i32
  }
  func.func @transform_1(%arg0: i32) -> (i32, i32) {
    %c0_i32 = arith.constant 0 : i32
    %c0_i32_0 = arith.constant 0 : i32
    return %arg0, %c0_i32 : i32, i32
  }
  func.func @transform_2(%arg0: i32) -> (i32, i32) {
    %c0_i32 = arith.constant 0 : i32
    %c0_i32_0 = arith.constant 0 : i32
    %c0_i32_1 = arith.constant 0 : i32
    return %c0_i32, %c0_i32_0 : i32, i32
  }
  func.func @transform_3(%arg0: i32) -> (i32, i32) {
    %c0_i32 = arith.constant 0 : i32
    %c0_i32_0 = arith.constant 0 : i32
    %c0_i32_1 = arith.constant 0 : i32
    return %c0_i32, %c0_i32_0 : i32, i32
  }
  func.func @transform_4(%arg0: i32) -> (i32, i32) {
    %c0_i32 = arith.constant 0 : i32
    %c0_i32_0 = arith.constant 0 : i32
    %c0_i32_1 = arith.constant 0 : i32
    return %c0_i32, %c0_i32_0 : i32, i32
  }
  func.func @transform_5(%arg0: i32) -> (i32, i32) {
    %c0_i32 = arith.constant 0 : i32
    %c0_i32_0 = arith.constant 0 : i32
    %c0_i32_1 = arith.constant 0 : i32
    return %c0_i32, %c0_i32_0 : i32, i32
  }
  func.func @transform_6(%arg0: i32) -> (i32, i32) {
    %c0_i32 = arith.constant 0 : i32
    %c0_i32_0 = arith.constant 0 : i32
    %c0_i32_1 = arith.constant 0 : i32
    return %c0_i32, %c0_i32_0 : i32, i32
  }
  func.func @transform_7(%arg0: i32) -> (i32, i32) {
    %c0_i32 = arith.constant 0 : i32
    %c0_i32_0 = arith.constant 0 : i32
    %c0_i32_1 = arith.constant 0 : i32
    return %c0_i32, %c0_i32_0 : i32, i32
  }
  func.func @transform_8(%arg0: i32) -> (i32, i32) {
    %c0_i32 = arith.constant 0 : i32
    %c0_i32_0 = arith.constant 0 : i32
    return %arg0, %c0_i32 : i32, i32
  }
}

</mosaic_0001>

<llo_original>
// kernel: tpu_custom_call.1
$region0: #{tpu_custom_call.1}
  #allocation0 [shape = 'u32[]', space=smem, size = 0x4, offset = 0x4, fixed_abs, tag = 'smem constant byte address 0x4 - core index']
  #allocation1 [shape = 'u32[144,128]{1,0:T(1,128)}', space=vmem, size = 0x12000, scoped, tag = 'internal scratch']
  %s0 = inlined_call_operand.vmem [shape: s32[48,5], index: 0, kind: input, shape index: {}]
  %s1 = inlined_call_operand.vmem [shape: s32[48,12], index: 1, kind: input, shape index: {}]
  %s2 = inlined_call_operand.vmem [shape: s32[2,860], index: 2, kind: input, shape index: {}]
  %s3 = inlined_call_operand.vmem [shape: bf16[500,64], index: 3, kind: input, shape index: {}]
  %s4 = inlined_call_operand.vmem [shape: bf16[360,320], index: 4, kind: input, shape index: {}]
  %s5 = inlined_call_operand.vmem [shape: bf16[32,64], index: 5, kind: input, shape index: {}]
  %s6 = inlined_call_operand.vmem [shape: bf16[64,128], index: 6, kind: input, shape index: {}]
  %s7 = inlined_call_operand.vmem [shape: f32[3,128], index: 7, kind: input, shape index: {}]
  %s8 = inlined_call_operand.hbm [shape: f32[48,128], index: 8, kind: output, shape index: {}]
  %s9 = sld [smem:[#allocation0]]
  $region65: #{tpu_custom_call.1} parent=0
    _
  %s11 = ssub.s32 1, %s9
  %s12 = scalar_select 0, %s11, %s9
  $region1: #{tpu_custom_call.1} parent=0
    #allocation2 [shape = 'u8[16384]{0}', space=vmem, size = 0x4000, scoped, tag = 'output window, operand 0']
    #allocation3 [shape = 's32[2]{0}', space=sflag, size = 0x8, scoped, tag = 'scoped memory for tpu_custom_call.1']
    %13 = vsyncpa [#allocation3], 0
    %s14 = scalar_lea.sflag [#allocation3], 1
    %15 = vsyncpa %s14, 0
    loop: start=0, step=1, limit=5
    $region2: #{tpu_custom_call.1} parent=1 // loop_pre_header
      _
    $region3: #{tpu_custom_call.1} parent=1 // loop_header
      %s17 = sphi 0, %s21
      %p18 = scmp.ge.s32.totalorder %s17, 5
      %s27 = sphi 0, %s29
      %s30 = sphi 0, %s27
      %s31 = sphi 0, %s30
      %s47 = sphi 0, %s31
      %s53 = sphi 0, %s55
      %s56 = sphi 0, %s53
      %s57 = sphi 0, %s56
      %s73 = sphi 0, %s57
      %s77 = sphi 0, %s77
      %s79 = sphi 0, %s77
      %s80 = sphi 0, %s79
      %s94 = sphi 0, %s80
      %s98 = sphi 0, %s98
      %s100 = sphi 0, %s98
      %s101 = sphi 0, %s100
      %s115 = sphi 0, %s101
      %s119 = sphi 0, %s119
      %s121 = sphi 0, %s119
      %s122 = sphi 0, %s121
      %s136 = sphi 0, %s122
      %s140 = sphi 0, %s140
      %s142 = sphi 0, %s140
      %s143 = sphi 0, %s142
      %s157 = sphi 0, %s143
      %s161 = sphi 0, %s161
      %s163 = sphi 0, %s161
      %s164 = sphi 0, %s163
      %s178 = sphi 0, %s164
      %s182 = sphi 0, %s182
      %s184 = sphi 0, %s182
      %s185 = sphi 0, %s184
      %s199 = sphi 0, %s185
      %s205 = sphi 0, %s207
      %s208 = sphi 0, %s205
      %s209 = sphi 0, %s208
      %s225 = sphi 0, %s209
    $region4: #{tpu_custom_call.1} parent=1 // loop_header_branch
      %20 = sbr.rel (%p18) target = $region8
    $region5: #{tpu_custom_call.1} parent=1 // loop_body
      %s22 = ssub.s32 %s17, 1
      %s23 = ssub.s32 %s17, 2
      %s24 = sadd.s32 %s17, 1
      %s25 = ssub.s32 %s17, %s24
      %p26 = scmp.eq.s32.totalorder %s25, 0
      %s28 = sadd.s32 %s27, 1
      %s29 = scalar_select %p26, %s27, %s28
      %p32 = pneg %p26
      %p33 = scmp.eq.s32.totalorder %s17, 2
      %p34 = por %p32, %p33
      %p35 = scmp.ne.s32.totalorder %s27, %s30
      %p36 = scmp.eq.s32.totalorder %s17, 0
      %p37 = por %p35, %p36
      %p38 = scmp.ne.s32.totalorder %s27, %s30
      %p39 = scmp.eq.s32.totalorder %s22, 2
      %p40 = por %p38, %p39
      %p41 = scmp.ne.s32.totalorder %s30, %s31
      %p42 = scmp.eq.s32.totalorder %s22, 0
      %p43 = por %p41, %p42
      %p44 = scmp.ne.s32.totalorder %s30, %s31
      %p45 = scmp.eq.s32.totalorder %s23, 2
      %p46 = por %p44, %p45
      %p48 = scmp.ne.s32.totalorder %s31, %s47
      %p49 = scmp.eq.s32.totalorder %s23, 0
      %p50 = por %p48, %p49
      %s51 = ssub.s32 %s17, %s24
      %p52 = scmp.eq.s32.totalorder %s51, 0
      %s54 = sadd.s32 %s53, 1
      %s55 = scalar_select %p52, %s53, %s54
      %p58 = pneg %p52
      %p59 = scmp.eq.s32.totalorder %s17, 2
      %p60 = por %p58, %p59
      %p61 = scmp.ne.s32.totalorder %s53, %s56
      %p62 = scmp.eq.s32.totalorder %s17, 0
      %p63 = por %p61, %p62
      %p64 = scmp.ne.s32.totalorder %s53, %s56
      %p65 = scmp.eq.s32.totalorder %s22, 2
      %p66 = por %p64, %p65
      %p67 = scmp.ne.s32.totalorder %s56, %s57
      %p68 = scmp.eq.s32.totalorder %s22, 0
      %p69 = por %p67, %p68
      %p70 = scmp.ne.s32.totalorder %s56, %s57
      %p71 = scmp.eq.s32.totalorder %s23, 2
      %p72 = por %p70, %p71
      %p74 = scmp.ne.s32.totalorder %s57, %s73
      %p75 = scmp.eq.s32.totalorder %s23, 0
      %p76 = por %p74, %p75
      %s78 = sadd.s32 %s77, 1
      %p81 = scmp.eq.s32.totalorder %s17, 2
      %p82 = scmp.ne.s32.totalorder %s77, %s79
      %p83 = scmp.eq.s32.totalorder %s17, 0
      %p84 = por %p82, %p83
      %p85 = scmp.ne.s32.totalorder %s77, %s79
      %p86 = scmp.eq.s32.totalorder %s22, 2
      %p87 = por %p85, %p86
      %p88 = scmp.ne.s32.totalorder %s79, %s80
      %p89 = scmp.eq.s32.totalorder %s22, 0
      %p90 = por %p88, %p89
      %p91 = scmp.ne.s32.totalorder %s79, %s80
      %p92 = scmp.eq.s32.totalorder %s23, 2
      %p93 = por %p91, %p92
      %p95 = scmp.ne.s32.totalorder %s80, %s94
      %p96 = scmp.eq.s32.totalorder %s23, 0
      %p97 = por %p95, %p96
      %s99 = sadd.s32 %s98, 1
      %p102 = scmp.eq.s32.totalorder %s17, 2
      %p103 = scmp.ne.s32.totalorder %s98, %s100
      %p104 = scmp.eq.s32.totalorder %s17, 0
      %p105 = por %p103, %p104
      %p106 = scmp.ne.s32.totalorder %s98, %s100
      %p107 = scmp.eq.s32.totalorder %s22, 2
      %p108 = por %p106, %p107
      %p109 = scmp.ne.s32.totalorder %s100, %s101
      %p110 = scmp.eq.s32.totalorder %s22, 0
      %p111 = por %p109, %p110
      %p112 = scmp.ne.s32.totalorder %s100, %s101
      %p113 = scmp.eq.s32.totalorder %s23, 2
      %p114 = por %p112, %p113
      %p116 = scmp.ne.s32.totalorder %s101, %s115
      %p117 = scmp.eq.s32.totalorder %s23, 0
      %p118 = por %p116, %p117
      %s120 = sadd.s32 %s119, 1
      %p123 = scmp.eq.s32.totalorder %s17, 2
      %p124 = scmp.ne.s32.totalorder %s119, %s121
      %p125 = scmp.eq.s32.totalorder %s17, 0
      %p126 = por %p124, %p125
      %p127 = scmp.ne.s32.totalorder %s119, %s121
      %p128 = scmp.eq.s32.totalorder %s22, 2
      %p129 = por %p127, %p128
      %p130 = scmp.ne.s32.totalorder %s121, %s122
      %p131 = scmp.eq.s32.totalorder %s22, 0
      %p132 = por %p130, %p131
      %p133 = scmp.ne.s32.totalorder %s121, %s122
      %p134 = scmp.eq.s32.totalorder %s23, 2
      %p135 = por %p133, %p134
      %p137 = scmp.ne.s32.totalorder %s122, %s136
      %p138 = scmp.eq.s32.totalorder %s23, 0
      %p139 = por %p137, %p138
      %s141 = sadd.s32 %s140, 1
      %p144 = scmp.eq.s32.totalorder %s17, 2
      %p145 = scmp.ne.s32.totalorder %s140, %s142
      %p146 = scmp.eq.s32.totalorder %s17, 0
      %p147 = por %p145, %p146
      %p148 = scmp.ne.s32.totalorder %s140, %s142
      %p149 = scmp.eq.s32.totalorder %s22, 2
      %p150 = por %p148, %p149
      %p151 = scmp.ne.s32.totalorder %s142, %s143
      %p152 = scmp.eq.s32.totalorder %s22, 0
      %p153 = por %p151, %p152
      %p154 = scmp.ne.s32.totalorder %s142, %s143
      %p155 = scmp.eq.s32.totalorder %s23, 2
      %p156 = por %p154, %p155
      %p158 = scmp.ne.s32.totalorder %s143, %s157
      %p159 = scmp.eq.s32.totalorder %s23, 0
      %p160 = por %p158, %p159
      %s162 = sadd.s32 %s161, 1
      %p165 = scmp.eq.s32.totalorder %s17, 2
      %p166 = scmp.ne.s32.totalorder %s161, %s163
      %p167 = scmp.eq.s32.totalorder %s17, 0
      %p168 = por %p166, %p167
      %p169 = scmp.ne.s32.totalorder %s161, %s163
      %p170 = scmp.eq.s32.totalorder %s22, 2
      %p171 = por %p169, %p170
      %p172 = scmp.ne.s32.totalorder %s163, %s164
      %p173 = scmp.eq.s32.totalorder %s22, 0
      %p174 = por %p172, %p173
      %p175 = scmp.ne.s32.totalorder %s163, %s164
      %p176 = scmp.eq.s32.totalorder %s23, 2
      %p177 = por %p175, %p176
      %p179 = scmp.ne.s32.totalorder %s164, %s178
      %p180 = scmp.eq.s32.totalorder %s23, 0
      %p181 = por %p179, %p180
      %s183 = sadd.s32 %s182, 1
      %p186 = scmp.eq.s32.totalorder %s17, 2
      %p187 = scmp.ne.s32.totalorder %s182, %s184
      %p188 = scmp.eq.s32.totalorder %s17, 0
      %p189 = por %p187, %p188
      %p190 = scmp.ne.s32.totalorder %s182, %s184
      %p191 = scmp.eq.s32.totalorder %s22, 2
      %p192 = por %p190, %p191
      %p193 = scmp.ne.s32.totalorder %s184, %s185
      %p194 = scmp.eq.s32.totalorder %s22, 0
      %p195 = por %p193, %p194
      %p196 = scmp.ne.s32.totalorder %s184, %s185
      %p197 = scmp.eq.s32.totalorder %s23, 2
      %p198 = por %p196, %p197
      %p200 = scmp.ne.s32.totalorder %s185, %s199
      %p201 = scmp.eq.s32.totalorder %s23, 0
      %p202 = por %p200, %p201
      %s203 = ssub.s32 %s17, %s24
      %p204 = scmp.eq.s32.totalorder %s203, 0
      %s206 = sadd.s32 %s205, 1
      %s207 = scalar_select %p204, %s205, %s206
      %p210 = pneg %p204
      %p211 = scmp.eq.s32.totalorder %s17, 2
      %p212 = por %p210, %p211
      %p213 = scmp.ne.s32.totalorder %s205, %s208
      %p214 = scmp.eq.s32.totalorder %s17, 0
      %p215 = por %p213, %p214
      %p216 = scmp.ne.s32.totalorder %s205, %s208
      %p217 = scmp.eq.s32.totalorder %s22, 2
      %p218 = por %p216, %p217
      %p219 = scmp.ne.s32.totalorder %s208, %s209
      %p220 = scmp.eq.s32.totalorder %s22, 0
      %p221 = por %p219, %p220
      %p222 = scmp.ne.s32.totalorder %s208, %s209
      %p223 = scmp.eq.s32.totalorder %s23, 2
      %p224 = por %p222, %p223
      %p226 = scmp.ne.s32.totalorder %s209, %s225
      %p227 = scmp.eq.s32.totalorder %s23, 0
      %p228 = por %p226, %p227
      %p229 = scmp.le.s32.totalorder 1, %s17
      %p230 = scmp.lt.s32.totalorder %s17, 4
      %p231 = pnand %p229, %p230
      %p232 = pneg %p231
      // Predicated region
      $region9: #{tpu_custom_call.1} parent=5 // pred_check
        _
      $region10: #{tpu_custom_call.1} parent=5 // pred_check_branch
        %234 = sbr.rel (%p231) target = $region12
      $region11: #{tpu_custom_call.1} parent=5 // pred_region
        %s235 = ssub.s32 %s17, 1
        // Predicated region
        $region13: #{tpu_custom_call.1} parent=11 // pred_check
          %p236 = pneg %p90
        $region14: #{tpu_custom_call.1} parent=11 // pred_check_branch
          %238 = sbr.rel (%p236) target = $region16
        $region15: #{tpu_custom_call.1} parent=11 // pred_region
          _
        $region16: #{tpu_custom_call.1} parent=11 // pred_fallthru
          _
        // Predicated region
        $region17: #{tpu_custom_call.1} parent=11 // pred_check
          %p239 = pneg %p111
        $region18: #{tpu_custom_call.1} parent=11 // pred_check_branch
          %241 = sbr.rel (%p239) target = $region20
        $region19: #{tpu_custom_call.1} parent=11 // pred_region
          _
        $region20: #{tpu_custom_call.1} parent=11 // pred_fallthru
          _
        // Predicated region
        $region21: #{tpu_custom_call.1} parent=11 // pred_check
          %p242 = pneg %p132
        $region22: #{tpu_custom_call.1} parent=11 // pred_check_branch
          %244 = sbr.rel (%p242) target = $region24
        $region23: #{tpu_custom_call.1} parent=11 // pred_region
          _
        $region24: #{tpu_custom_call.1} parent=11 // pred_fallthru
          _
        // Predicated region
        $region25: #{tpu_custom_call.1} parent=11 // pred_check
          %p245 = pneg %p153
        $region26: #{tpu_custom_call.1} parent=11 // pred_check_branch
          %247 = sbr.rel (%p245) target = $region28
        $region27: #{tpu_custom_call.1} parent=11 // pred_region
          _
        $region28: #{tpu_custom_call.1} parent=11 // pred_fallthru
          _
        // Predicated region
        $region29: #{tpu_custom_call.1} parent=11 // pred_check
          %p248 = pneg %p174
        $region30: #{tpu_custom_call.1} parent=11 // pred_check_branch
          %250 = sbr.rel (%p248) target = $region32
        $region31: #{tpu_custom_call.1} parent=11 // pred_region
          _
        $region32: #{tpu_custom_call.1} parent=11 // pred_fallthru
          _
        // Predicated region
        $region33: #{tpu_custom_call.1} parent=11 // pred_check
          %p251 = pneg %p195
        $region34: #{tpu_custom_call.1} parent=11 // pred_check_branch
          %253 = sbr.rel (%p251) target = $region36
        $region35: #{tpu_custom_call.1} parent=11 // pred_region
          _
        $region36: #{tpu_custom_call.1} parent=11 // pred_fallthru
          _
      $region12: #{tpu_custom_call.1} parent=5 // pred_fallthru
        _
      %p254 = scmp.lt.s32.totalorder %s17, 3
      // Predicated region
      $region37: #{tpu_custom_call.1} parent=5 // pred_check
        %p255 = pneg %p254
      $region38: #{tpu_custom_call.1} parent=5 // pred_check_branch
        %257 = sbr.rel (%p255) target = $region40
      $region39: #{tpu_custom_call.1} parent=5 // pred_region
        // Predicated region
        $region41: #{tpu_custom_call.1} parent=39 // pred_check
          %p258 = pneg %p37
        $region42: #{tpu_custom_call.1} parent=39 // pred_check_branch
          %260 = sbr.rel (%p258) target = $region44
        $region43: #{tpu_custom_call.1} parent=39 // pred_region
          %s261 = smul.u32 2, %s17
          %p262 = scmp.lt.s32.totalorder %s261, 5
          %s263 = scalar_select %p262, %s261, 5
          %s264 = smul.addr %s263, 8
          %s265 = scalar_lea.vmem %s0, %s264
          %s266 = smul.u32 2, %s17
        $region44: #{tpu_custom_call.1} parent=39 // pred_fallthru
          _
        // Predicated region
        $region45: #{tpu_custom_call.1} parent=39 // pred_check
          %p267 = pneg %p63
        $region46: #{tpu_custom_call.1} parent=39 // pred_check_branch
          %269 = sbr.rel (%p267) target = $region48
        $region47: #{tpu_custom_call.1} parent=39 // pred_region
          %s270 = smul.u32 2, %s17
          %p271 = scmp.lt.s32.totalorder %s270, 5
          %s272 = scalar_select %p271, %s270, 5
          %s273 = smul.addr %s272, 8
          %s274 = scalar_lea.vmem %s1, %s273
          %s275 = smul.u32 2, %s17
        $region48: #{tpu_custom_call.1} parent=39 // pred_fallthru
          _
      $region40: #{tpu_custom_call.1} parent=5 // pred_fallthru
        _
      %p276 = scmp.le.s32.totalorder 1, %s17
      %p277 = scmp.lt.s32.totalorder %s17, 4
      %p278 = pnand %p276, %p277
      %p279 = pneg %p278
      // Predicated region
      $region49: #{tpu_custom_call.1} parent=5 // pred_check
        _
      $region50: #{tpu_custom_call.1} parent=5 // pred_check_branch
        %281 = sbr.rel (%p278) target = $region52
      $region51: #{tpu_custom_call.1} parent=5 // pred_region
        %s282 = ssub.s32 %s17, 1
        %s283 = smul.u32 2, %s22
        %p284 = scmp.lt.s32.totalorder %s283, 5
        %s285 = scalar_select %p284, %s283, 5
        %s286 = smul.addr %s285, 8
        %s287 = scalar_lea.vmem %s0, %s286
        %p288 = pneg %p43
        %p289 = pneg %p40
        %s290 = smul.u32 2, %s22
        %p291 = scmp.lt.s32.totalorder %s290, 5
        %s292 = scalar_select %p291, %s290, 5
        %s293 = smul.addr %s292, 8
        %s294 = scalar_lea.vmem %s1, %s293
        %p295 = pneg %p69
        %p296 = pneg %p66
        %p297 = pneg %p90
        %p298 = pneg %p87
        %p299 = pneg %p111
        %p300 = pneg %p108
        %p301 = pneg %p132
        %p302 = pneg %p129
        %p303 = pneg %p153
        %p304 = pneg %p150
        %p305 = pneg %p174
        %p306 = pneg %p171
        %p307 = pneg %p195
        %p308 = pneg %p192
        %p309 = pneg %p221
        %p310 = pneg %p218
        %s311 = sand.u32 %s208, 1
        %s312 = scalar_lea.sflag [#allocation3], %s311
        %s313 = sand.u32 %s208, 1
        %s314 = smul.addr %s313, 16
        %s315 = scalar_lea.vmem [#allocation2], %s314
        %s316 = smul.u32 2, %s22
        %p317 = scmp.lt.s32.totalorder %s316, 5
        %s318 = scalar_select %p317, %s316, 5
        %s319 = smul.addr %s318, 8
        %s320 = scalar_lea.vmem %s0, %s319
        %s321 = smul.u32 2, %s22
        %s322 = smul.u32 2, %s22
        %p323 = scmp.lt.s32.totalorder %s322, 5
        %s324 = scalar_select %p323, %s322, 5
        %s325 = smul.addr %s324, 8
        %s326 = scalar_lea.vmem %s1, %s325
        %s327 = smul.u32 2, %s22
        %s328 = smul.u32 2, %s22
        %v330 = vld [vmem:[%s320] sm:$0xff]
        %v331 = vld [vmem:[%s320 + $0x8] sm:$0xff]
        %v332 = vld [vmem:[%s326] sm:$0xff]
        %v333 = vld [vmem:[%s326 + $0x8] sm:$0xff]
        %v334 = vld [vmem:[%s2] ss:$2 sm:$0xf]
        %s335 = scalar_lea.vmem %s2, 1
        %v336 = vld [vmem:[%s335] ss:$2 sm:$0xf]
        %vm337 = vcmp.eq.s32.totalorder %v334, 0
        %v338 = vsel %vm337, 1, 0
        %v339 = vlaneseq
        %v340 = vshrl.u32 %v339, 7
        %v341 = vsub.s32 0, %v340
        %v342 = vrot.slane %v338, %v341
        %v343 = vlaneseq
        %v344 = vshrl.u32 %v343, 7
        %v345 = vsub.s32 1, %v344
        %v346 = vrot.slane %v338, %v345
        %v347 = vlaneseq
        %v348 = vshrl.u32 %v347, 7
        %v349 = vsub.s32 2, %v348
        %v350 = vrot.slane %v338, %v349
        %v351 = vlaneseq
        %v352 = vshrl.u32 %v351, 7
        %v353 = vsub.s32 3, %v352
        %v354 = vrot.slane %v338, %v353
        %vm355 = vcmp.eq.s32.totalorder %v342, 1
        %vm356 = vcmp.eq.s32.totalorder %v346, 1
        %vm357 = vcmp.eq.s32.totalorder %v350, 1
        %vm358 = vcmp.eq.s32.totalorder %v354, 1
        %359 = vset.pattern.permute.xlu0 0
        %360 = vperm.xlu0 %359, %v330
        %v361 = vpop.permute.xlu0 %360
        %362 = vset.pattern.permute.xlu0 0
        %363 = vperm.xlu0 %362, %v331
        %v364 = vpop.permute.xlu0 %363
        %v365 = vsel %vm355, %v361, 0
        %v366 = vsel %vm356, %v361, 0
        %v367 = vsel %vm357, %v361, 0
        %v368 = vsel %vm358, %v361, 0
        %v369 = vsel %vm355, %v364, 0
        %v370 = vsel %vm356, %v364, 0
        %v371 = vsel %vm357, %v364, 0
        %v372 = vsel %vm358, %v364, 0
        %vm373 = vcmp.eq.s32.totalorder %v334, 1
        %v374 = vsel %vm373, 1, 0
        %v375 = vlaneseq
        %v376 = vshrl.u32 %v375, 7
        %v377 = vsub.s32 0, %v376
        %v378 = vrot.slane %v374, %v377
        %v379 = vlaneseq
        %v380 = vshrl.u32 %v379, 7
        %v381 = vsub.s32 1, %v380
        %v382 = vrot.slane %v374, %v381
        %v383 = vlaneseq
        %v384 = vshrl.u32 %v383, 7
        %v385 = vsub.s32 2, %v384
        %v386 = vrot.slane %v374, %v385
        %v387 = vlaneseq
        %v388 = vshrl.u32 %v387, 7
        %v389 = vsub.s32 3, %v388
        %v390 = vrot.slane %v374, %v389
        %vm391 = vcmp.eq.s32.totalorder %v378, 1
        %vm392 = vcmp.eq.s32.totalorder %v382, 1
        %vm393 = vcmp.eq.s32.totalorder %v386, 1
        %vm394 = vcmp.eq.s32.totalorder %v390, 1
        %395 = vset.pattern.permute.xlu0 1
        %396 = vperm.xlu0 %395, %v330
        %v397 = vpop.permute.xlu0 %396
        %398 = vset.pattern.permute.xlu0 1
        %399 = vperm.xlu0 %398, %v331
        %v400 = vpop.permute.xlu0 %399
        %v401 = vsel %vm391, %v397, %v365
        %v402 = vsel %vm392, %v397, %v366
        %v403 = vsel %vm393, %v397, %v367
        %v404 = vsel %vm394, %v397, %v368
        %v405 = vsel %vm391, %v400, %v369
        %v406 = vsel %vm392, %v400, %v370
        %v407 = vsel %vm393, %v400, %v371
        %v408 = vsel %vm394, %v400, %v372
        %vm409 = vcmp.eq.s32.totalorder %v334, 2
        %v410 = vsel %vm409, 1, 0
        %v411 = vlaneseq
        %v412 = vshrl.u32 %v411, 7
        %v413 = vsub.s32 0, %v412
        %v414 = vrot.slane %v410, %v413
        %v415 = vlaneseq
        %v416 = vshrl.u32 %v415, 7
        %v417 = vsub.s32 1, %v416
        %v418 = vrot.slane %v410, %v417
        %v419 = vlaneseq
        %v420 = vshrl.u32 %v419, 7
        %v421 = vsub.s32 2, %v420
        %v422 = vrot.slane %v410, %v421
        %v423 = vlaneseq
        %v424 = vshrl.u32 %v423, 7
        %v425 = vsub.s32 3, %v424
        %v426 = vrot.slane %v410, %v425
        %vm427 = vcmp.eq.s32.totalorder %v414, 1
        %vm428 = vcmp.eq.s32.totalorder %v418, 1
        %vm429 = vcmp.eq.s32.totalorder %v422, 1
        %vm430 = vcmp.eq.s32.totalorder %v426, 1
        %431 = vset.pattern.permute.xlu0 2
        %432 = vperm.xlu0 %431, %v330
        %v433 = vpop.permute.xlu0 %432
        %434 = vset.pattern.permute.xlu0 2
        %435 = vperm.xlu0 %434, %v331
        %v436 = vpop.permute.xlu0 %435
        %v437 = vsel %vm427, %v433, %v401
        %v438 = vsel %vm428, %v433, %v402
        %v439 = vsel %vm429, %v433, %v403
        %v440 = vsel %vm430, %v433, %v404
        %v441 = vsel %vm427, %v436, %v405
        %v442 = vsel %vm428, %v436, %v406
        %v443 = vsel %vm429, %v436, %v407
        %v444 = vsel %vm430, %v436, %v408
        %vm445 = vcmp.eq.s32.totalorder %v334, 3
        %v446 = vsel %vm445, 1, 0
        %v447 = vlaneseq
        %v448 = vshrl.u32 %v447, 7
        %v449 = vsub.s32 0, %v448
        %v450 = vrot.slane %v446, %v449
        %v451 = vlaneseq
        %v452 = vshrl.u32 %v451, 7
        %v453 = vsub.s32 1, %v452
        %v454 = vrot.slane %v446, %v453
        %v455 = vlaneseq
        %v456 = vshrl.u32 %v455, 7
        %v457 = vsub.s32 2, %v456
        %v458 = vrot.slane %v446, %v457
        %v459 = vlaneseq
        %v460 = vshrl.u32 %v459, 7
        %v461 = vsub.s32 3, %v460
        %v462 = vrot.slane %v446, %v461
        %vm463 = vcmp.eq.s32.totalorder %v450, 1
        %vm464 = vcmp.eq.s32.totalorder %v454, 1
        %vm465 = vcmp.eq.s32.totalorder %v458, 1
        %vm466 = vcmp.eq.s32.totalorder %v462, 1
        %467 = vset.pattern.permute.xlu0 3
        %468 = vperm.xlu0 %467, %v330
        %v469 = vpop.permute.xlu0 %468
        %470 = vset.pattern.permute.xlu0 3
        %471 = vperm.xlu0 %470, %v331
        %v472 = vpop.permute.xlu0 %471
        %v473 = vsel %vm463, %v469, %v437
        %v474 = vsel %vm464, %v469, %v438
        %v475 = vsel %vm465, %v469, %v439
        %v476 = vsel %vm466, %v469, %v440
        %v477 = vsel %vm463, %v472, %v441
        %v478 = vsel %vm464, %v472, %v442
        %v479 = vsel %vm465, %v472, %v443
        %v480 = vsel %vm466, %v472, %v444
        %vm481 = vcmp.eq.s32.totalorder %v334, 4
        %v482 = vsel %vm481, 1, 0
        %v483 = vlaneseq
        %v484 = vshrl.u32 %v483, 7
        %v485 = vsub.s32 0, %v484
        %v486 = vrot.slane %v482, %v485
        %v487 = vlaneseq
        %v488 = vshrl.u32 %v487, 7
        %v489 = vsub.s32 1, %v488
        %v490 = vrot.slane %v482, %v489
        %v491 = vlaneseq
        %v492 = vshrl.u32 %v491, 7
        %v493 = vsub.s32 2, %v492
        %v494 = vrot.slane %v482, %v493
        %v495 = vlaneseq
        %v496 = vshrl.u32 %v495, 7
        %v497 = vsub.s32 3, %v496
        %v498 = vrot.slane %v482, %v497
        %vm499 = vcmp.eq.s32.totalorder %v486, 1
        %vm500 = vcmp.eq.s32.totalorder %v490, 1
        %vm501 = vcmp.eq.s32.totalorder %v494, 1
        %vm502 = vcmp.eq.s32.totalorder %v498, 1
        %503 = vset.pattern.permute.xlu0 4
        %504 = vperm.xlu0 %503, %v330
        %v505 = vpop.permute.xlu0 %504
        %506 = vset.pattern.permute.xlu0 4
        %507 = vperm.xlu0 %506, %v331
        %v508 = vpop.permute.xlu0 %507
        %v509 = vsel %vm499, %v505, %v473
        %v510 = vsel %vm500, %v505, %v474
        %v511 = vsel %vm501, %v505, %v475
        %v512 = vsel %vm502, %v505, %v476
        %v513 = vsel %vm499, %v508, %v477
        %v514 = vsel %vm500, %v508, %v478
        %v515 = vsel %vm501, %v508, %v479
        %v516 = vsel %vm502, %v508, %v480
        %v517 = vlaneseq
        %v518 = vshrl.u32 %v517, 7
        %v519 = vsub.s32 0, %v518
        %v520 = vrot.slane %v336, %v519
        %v521 = vlaneseq
        %v522 = vshrl.u32 %v521, 7
        %v523 = vsub.s32 1, %v522
        %v524 = vrot.slane %v336, %v523
        %v525 = vlaneseq
        %v526 = vshrl.u32 %v525, 7
        %v527 = vsub.s32 2, %v526
        %v528 = vrot.slane %v336, %v527
        %v529 = vlaneseq
        %v530 = vshrl.u32 %v529, 7
        %v531 = vsub.s32 3, %v530
        %v532 = vrot.slane %v336, %v531
        %vm533 = vcmp.eq.s32.totalorder %v509, %v520
        %vm534 = vcmp.eq.s32.totalorder %v510, %v524
        %vm535 = vcmp.eq.s32.totalorder %v511, %v528
        %vm536 = vcmp.eq.s32.totalorder %v512, %v532
        %vm537 = vcmp.eq.s32.totalorder %v513, %v520
        %vm538 = vcmp.eq.s32.totalorder %v514, %v524
        %vm539 = vcmp.eq.s32.totalorder %v515, %v528
        %vm540 = vcmp.eq.s32.totalorder %v516, %v532
        %v541 = vsel %vm533, 1.0, 0.0
        %v542 = vsel %vm534, 1.0, 0.0
        %v543 = vsel %vm535, 1.0, 0.0
        %v544 = vsel %vm536, 1.0, 0.0
        %v545 = vsel %vm537, 1.0, 0.0
        %v546 = vsel %vm538, 1.0, 0.0
        %v547 = vsel %vm539, 1.0, 0.0
        %v548 = vsel %vm540, 1.0, 0.0
        %v549 = vpack.c.bf16 %v545, %v541
        %v550 = vpack.c.bf16 %v546, %v542
        %v551 = vpack.c.bf16 %v547, %v543
        %v552 = vpack.c.bf16 %v548, %v544
        %v553 = vld [vmem:[%s3] sm:$0xf]
        %v554 = vld [vmem:[%s3 + $0x4] sm:$0xf]
        %v555 = vld [vmem:[%s3 + $0x8] sm:$0xf]
        %v556 = vld [vmem:[%s3 + $0xc] sm:$0xf]
        %v557 = vld [vmem:[%s3 + $0x10] sm:$0xf]
        %v558 = vld [vmem:[%s3 + $0x14] sm:$0xf]
        %v559 = vld [vmem:[%s3 + $0x18] sm:$0xf]
        %v560 = vld [vmem:[%s3 + $0x1c] sm:$0xf]
        %v561 = vld [vmem:[%s3 + $0x20] sm:$0xf]
        %v562 = vld [vmem:[%s3 + $0x24] sm:$0xf]
        %v563 = vld [vmem:[%s3 + $0x28] sm:$0xf]
        %v564 = vld [vmem:[%s3 + $0x2c] sm:$0xf]
        %v565 = vld [vmem:[%s3 + $0x30] sm:$0xf]
        %v566 = vld [vmem:[%s3 + $0x34] sm:$0xf]
        %v567 = vld [vmem:[%s3 + $0x38] sm:$0xf]
        %v568 = vld [vmem:[%s3 + $0x3c] sm:$0xf]
        %v569 = vld [vmem:[%s3 + $0x40] sm:$0xf]
        %v570 = vld [vmem:[%s3 + $0x44] sm:$0xf]
        %v571 = vld [vmem:[%s3 + $0x48] sm:$0xf]
        %v572 = vld [vmem:[%s3 + $0x4c] sm:$0xf]
        %v573 = vld [vmem:[%s3 + $0x50] sm:$0xf]
        %v574 = vld [vmem:[%s3 + $0x54] sm:$0xf]
        %v575 = vld [vmem:[%s3 + $0x58] sm:$0xf]
        %v576 = vld [vmem:[%s3 + $0x5c] sm:$0xf]
        %v577 = vld [vmem:[%s3 + $0x60] sm:$0xf]
        %v578 = vld [vmem:[%s3 + $0x64] sm:$0xf]
        %v579 = vld [vmem:[%s3 + $0x68] sm:$0xf]
        %v580 = vld [vmem:[%s3 + $0x6c] sm:$0xf]
        %v581 = vld [vmem:[%s3 + $0x70] sm:$0xf]
        %v582 = vld [vmem:[%s3 + $0x74] sm:$0xf]
        %v583 = vld [vmem:[%s3 + $0x78] sm:$0xf]
        %v584 = vld [vmem:[%s3 + $0x7c] sm:$0xf]
        %v585 = vld [vmem:[%s3 + $0x80] sm:$0xf]
        %v586 = vld [vmem:[%s3 + $0x84] sm:$0xf]
        %v587 = vld [vmem:[%s3 + $0x88] sm:$0xf]
        %v588 = vld [vmem:[%s3 + $0x8c] sm:$0xf]
        %v589 = vld [vmem:[%s3 + $0x90] sm:$0xf]
        %v590 = vld [vmem:[%s3 + $0x94] sm:$0xf]
        %v591 = vld [vmem:[%s3 + $0x98] sm:$0xf]
        %v592 = vld [vmem:[%s3 + $0x9c] sm:$0xf]
        %v593 = vld [vmem:[%s3 + $0xa0] sm:$0xf]
        %v594 = vld [vmem:[%s3 + $0xa4] sm:$0xf]
        %v595 = vld [vmem:[%s3 + $0xa8] sm:$0xf]
        %v596 = vld [vmem:[%s3 + $0xac] sm:$0xf]
        %v597 = vld [vmem:[%s3 + $0xb0] sm:$0xf]
        %v598 = vld [vmem:[%s3 + $0xb4] sm:$0xf]
        %v599 = vld [vmem:[%s3 + $0xb8] sm:$0xf]
        %v600 = vld [vmem:[%s3 + $0xbc] sm:$0xf]
        %v601 = vld [vmem:[%s3 + $0xc0] sm:$0xf]
        %v602 = vld [vmem:[%s3 + $0xc4] sm:$0xf]
        %v603 = vld [vmem:[%s3 + $0xc8] sm:$0xf]
        %v604 = vld [vmem:[%s3 + $0xcc] sm:$0xf]
        %v605 = vld [vmem:[%s3 + $0xd0] sm:$0xf]
        %v606 = vld [vmem:[%s3 + $0xd4] sm:$0xf]
        %v607 = vld [vmem:[%s3 + $0xd8] sm:$0xf]
        %v608 = vld [vmem:[%s3 + $0xdc] sm:$0xf]
        %v609 = vld [vmem:[%s3 + $0xe0] sm:$0xf]
        %v610 = vld [vmem:[%s3 + $0xe4] sm:$0xf]
        %v611 = vld [vmem:[%s3 + $0xe8] sm:$0xf]
        %v612 = vld [vmem:[%s3 + $0xec] sm:$0xf]
        %v613 = vld [vmem:[%s3 + $0xf0] sm:$0xf]
        %v614 = vld [vmem:[%s3 + $0xf4] sm:$0xf]
        %v615 = vld [vmem:[%s3 + $0xf8] sm:$0x3]
        %s616 = scalar_lea.vmem %s2, 6
        %v617 = vld [vmem:[%s616] ss:$2 sm:$0xf]
        %s618 = scalar_lea.vmem %s2, 7
        %v619 = vld [vmem:[%s618] ss:$2 sm:$0xf]
        %vm620 = vcmp.eq.s32.totalorder %v617, 0
        %v621 = vsel %vm620, 1, 0
        %v622 = vlaneseq
        %v623 = vshrl.u32 %v622, 7
        %v624 = vsub.s32 0, %v623
        %v625 = vrot.slane %v621, %v624
        %v626 = vlaneseq
        %v627 = vshrl.u32 %v626, 7
        %v628 = vsub.s32 1, %v627
        %v629 = vrot.slane %v621, %v628
        %v630 = vlaneseq
        %v631 = vshrl.u32 %v630, 7
        %v632 = vsub.s32 2, %v631
        %v633 = vrot.slane %v621, %v632
        %v634 = vlaneseq
        %v635 = vshrl.u32 %v634, 7
        %v636 = vsub.s32 3, %v635
        %v637 = vrot.slane %v621, %v636
        %vm638 = vcmp.eq.s32.totalorder %v625, 1
        %vm639 = vcmp.eq.s32.totalorder %v629, 1
        %vm640 = vcmp.eq.s32.totalorder %v633, 1
        %vm641 = vcmp.eq.s32.totalorder %v637, 1
        %642 = vset.pattern.permute.xlu0 0
        %643 = vperm.xlu0 %642, %v332
        %v644 = vpop.permute.xlu0 %643
        %645 = vset.pattern.permute.xlu0 0
        %646 = vperm.xlu0 %645, %v333
        %v647 = vpop.permute.xlu0 %646
        %v648 = vsel %vm638, %v644, 0
        %v649 = vsel %vm639, %v644, 0
        %v650 = vsel %vm640, %v644, 0
        %v651 = vsel %vm641, %v644, 0
        %v652 = vsel %vm638, %v647, 0
        %v653 = vsel %vm639, %v647, 0
        %v654 = vsel %vm640, %v647, 0
        %v655 = vsel %vm641, %v647, 0
        %vm656 = vcmp.eq.s32.totalorder %v617, 1
        %v657 = vsel %vm656, 1, 0
        %v658 = vlaneseq
        %v659 = vshrl.u32 %v658, 7
        %v660 = vsub.s32 0, %v659
        %v661 = vrot.slane %v657, %v660
        %v662 = vlaneseq
        %v663 = vshrl.u32 %v662, 7
        %v664 = vsub.s32 1, %v663
        %v665 = vrot.slane %v657, %v664
        %v666 = vlaneseq
        %v667 = vshrl.u32 %v666, 7
        %v668 = vsub.s32 2, %v667
        %v669 = vrot.slane %v657, %v668
        %v670 = vlaneseq
        %v671 = vshrl.u32 %v670, 7
        %v672 = vsub.s32 3, %v671
        %v673 = vrot.slane %v657, %v672
        %vm674 = vcmp.eq.s32.totalorder %v661, 1
        %vm675 = vcmp.eq.s32.totalorder %v665, 1
        %vm676 = vcmp.eq.s32.totalorder %v669, 1
        %vm677 = vcmp.eq.s32.totalorder %v673, 1
        %678 = vset.pattern.permute.xlu0 1
        %679 = vperm.xlu0 %678, %v332
        %v680 = vpop.permute.xlu0 %679
        %681 = vset.pattern.permute.xlu0 1
        %682 = vperm.xlu0 %681, %v333
        %v683 = vpop.permute.xlu0 %682
        %v684 = vsel %vm674, %v680, %v648
        %v685 = vsel %vm675, %v680, %v649
        %v686 = vsel %vm676, %v680, %v650
        %v687 = vsel %vm677, %v680, %v651
        %v688 = vsel %vm674, %v683, %v652
        %v689 = vsel %vm675, %v683, %v653
        %v690 = vsel %vm676, %v683, %v654
        %v691 = vsel %vm677, %v683, %v655
        %vm692 = vcmp.eq.s32.totalorder %v617, 2
        %v693 = vsel %vm692, 1, 0
        %v694 = vlaneseq
        %v695 = vshrl.u32 %v694, 7
        %v696 = vsub.s32 0, %v695
        %v697 = vrot.slane %v693, %v696
        %v698 = vlaneseq
        %v699 = vshrl.u32 %v698, 7
        %v700 = vsub.s32 1, %v699
        %v701 = vrot.slane %v693, %v700
        %v702 = vlaneseq
        %v703 = vshrl.u32 %v702, 7
        %v704 = vsub.s32 2, %v703
        %v705 = vrot.slane %v693, %v704
        %v706 = vlaneseq
        %v707 = vshrl.u32 %v706, 7
        %v708 = vsub.s32 3, %v707
        %v709 = vrot.slane %v693, %v708
        %vm710 = vcmp.eq.s32.totalorder %v697, 1
        %vm711 = vcmp.eq.s32.totalorder %v701, 1
        %vm712 = vcmp.eq.s32.totalorder %v705, 1
        %vm713 = vcmp.eq.s32.totalorder %v709, 1
        %714 = vset.pattern.permute.xlu0 2
        %715 = vperm.xlu0 %714, %v332
        %v716 = vpop.permute.xlu0 %715
        %717 = vset.pattern.permute.xlu0 2
        %718 = vperm.xlu0 %717, %v333
        %v719 = vpop.permute.xlu0 %718
        %v720 = vsel %vm710, %v716, %v684
        %v721 = vsel %vm711, %v716, %v685
        %v722 = vsel %vm712, %v716, %v686
        %v723 = vsel %vm713, %v716, %v687
        %v724 = vsel %vm710, %v719, %v688
        %v725 = vsel %vm711, %v719, %v689
        %v726 = vsel %vm712, %v719, %v690
        %v727 = vsel %vm713, %v719, %v691
        %vm728 = vcmp.eq.s32.totalorder %v617, 3
        %v729 = vsel %vm728, 1, 0
        %v730 = vlaneseq
        %v731 = vshrl.u32 %v730, 7
        %v732 = vsub.s32 0, %v731
        %v733 = vrot.slane %v729, %v732
        %v734 = vlaneseq
        %v735 = vshrl.u32 %v734, 7
        %v736 = vsub.s32 1, %v735
        %v737 = vrot.slane %v729, %v736
        %v738 = vlaneseq
        %v739 = vshrl.u32 %v738, 7
        %v740 = vsub.s32 2, %v739
        %v741 = vrot.slane %v729, %v740
        %v742 = vlaneseq
        %v743 = vshrl.u32 %v742, 7
        %v744 = vsub.s32 3, %v743
        %v745 = vrot.slane %v729, %v744
        %vm746 = vcmp.eq.s32.totalorder %v733, 1
        %vm747 = vcmp.eq.s32.totalorder %v737, 1
        %vm748 = vcmp.eq.s32.totalorder %v741, 1
        %vm749 = vcmp.eq.s32.totalorder %v745, 1
        %750 = vset.pattern.permute.xlu0 3
        %751 = vperm.xlu0 %750, %v332
        %v752 = vpop.permute.xlu0 %751
        %753 = vset.pattern.permute.xlu0 3
        %754 = vperm.xlu0 %753, %v333
        %v755 = vpop.permute.xlu0 %754
        %v756 = vsel %vm746, %v752, %v720
        %v757 = vsel %vm747, %v752, %v721
        %v758 = vsel %vm748, %v752, %v722
        %v759 = vsel %vm749, %v752, %v723
        %v760 = vsel %vm746, %v755, %v724
        %v761 = vsel %vm747, %v755, %v725
        %v762 = vsel %vm748, %v755, %v726
        %v763 = vsel %vm749, %v755, %v727
        %vm764 = vcmp.eq.s32.totalorder %v617, 4
        %v765 = vsel %vm764, 1, 0
        %v766 = vlaneseq
        %v767 = vshrl.u32 %v766, 7
        %v768 = vsub.s32 0, %v767
        %v769 = vrot.slane %v765, %v768
        %v770 = vlaneseq
        %v771 = vshrl.u32 %v770, 7
        %v772 = vsub.s32 1, %v771
        %v773 = vrot.slane %v765, %v772
        %v774 = vlaneseq
        %v775 = vshrl.u32 %v774, 7
        %v776 = vsub.s32 2, %v775
        %v777 = vrot.slane %v765, %v776
        %v778 = vlaneseq
        %v779 = vshrl.u32 %v778, 7
        %v780 = vsub.s32 3, %v779
        %v781 = vrot.slane %v765, %v780
        %vm782 = vcmp.eq.s32.totalorder %v769, 1
        %vm783 = vcmp.eq.s32.totalorder %v773, 1
        %vm784 = vcmp.eq.s32.totalorder %v777, 1
        %vm785 = vcmp.eq.s32.totalorder %v781, 1
        %786 = vset.pattern.permute.xlu0 4
        %787 = vperm.xlu0 %786, %v332
        %v788 = vpop.permute.xlu0 %787
        %789 = vset.pattern.permute.xlu0 4
        %790 = vperm.xlu0 %789, %v333
        %v791 = vpop.permute.xlu0 %790
        %v792 = vsel %vm782, %v788, %v756
        %v793 = vsel %vm783, %v788, %v757
        %v794 = vsel %vm784, %v788, %v758
        %v795 = vsel %vm785, %v788, %v759
        %v796 = vsel %vm782, %v791, %v760
        %v797 = vsel %vm783, %v791, %v761
        %v798 = vsel %vm784, %v791, %v762
        %v799 = vsel %vm785, %v791, %v763
        %vm800 = vcmp.eq.s32.totalorder %v617, 5
        %v801 = vsel %vm800, 1, 0
        %v802 = vlaneseq
        %v803 = vshrl.u32 %v802, 7
        %v804 = vsub.s32 0, %v803
        %v805 = vrot.slane %v801, %v804
        %v806 = vlaneseq
        %v807 = vshrl.u32 %v806, 7
        %v808 = vsub.s32 1, %v807
        %v809 = vrot.slane %v801, %v808
        %v810 = vlaneseq
        %v811 = vshrl.u32 %v810, 7
        %v812 = vsub.s32 2, %v811
        %v813 = vrot.slane %v801, %v812
        %v814 = vlaneseq
        %v815 = vshrl.u32 %v814, 7
        %v816 = vsub.s32 3, %v815
        %v817 = vrot.slane %v801, %v816
        %vm818 = vcmp.eq.s32.totalorder %v805, 1
        %vm819 = vcmp.eq.s32.totalorder %v809, 1
        %vm820 = vcmp.eq.s32.totalorder %v813, 1
        %vm821 = vcmp.eq.s32.totalorder %v817, 1
        %822 = vset.pattern.permute.xlu0 5
        %823 = vperm.xlu0 %822, %v332
        %v824 = vpop.permute.xlu0 %823
        %825 = vset.pattern.permute.xlu0 5
        %826 = vperm.xlu0 %825, %v333
        %v827 = vpop.permute.xlu0 %826
        %v828 = vsel %vm818, %v824, %v792
        %v829 = vsel %vm819, %v824, %v793
        %v830 = vsel %vm820, %v824, %v794
        %v831 = vsel %vm821, %v824, %v795
        %v832 = vsel %vm818, %v827, %v796
        %v833 = vsel %vm819, %v827, %v797
        %v834 = vsel %vm820, %v827, %v798
        %v835 = vsel %vm821, %v827, %v799
        %vm836 = vcmp.eq.s32.totalorder %v617, 6
        %v837 = vsel %vm836, 1, 0
        %v838 = vlaneseq
        %v839 = vshrl.u32 %v838, 7
        %v840 = vsub.s32 0, %v839
        %v841 = vrot.slane %v837, %v840
        %v842 = vlaneseq
        %v843 = vshrl.u32 %v842, 7
        %v844 = vsub.s32 1, %v843
        %v845 = vrot.slane %v837, %v844
        %v846 = vlaneseq
        %v847 = vshrl.u32 %v846, 7
        %v848 = vsub.s32 2, %v847
        %v849 = vrot.slane %v837, %v848
        %v850 = vlaneseq
        %v851 = vshrl.u32 %v850, 7
        %v852 = vsub.s32 3, %v851
        %v853 = vrot.slane %v837, %v852
        %vm854 = vcmp.eq.s32.totalorder %v841, 1
        %vm855 = vcmp.eq.s32.totalorder %v845, 1
        %vm856 = vcmp.eq.s32.totalorder %v849, 1
        %vm857 = vcmp.eq.s32.totalorder %v853, 1
        %858 = vset.pattern.permute.xlu0 6
        %859 = vperm.xlu0 %858, %v332
        %v860 = vpop.permute.xlu0 %859
        %861 = vset.pattern.permute.xlu0 6
        %862 = vperm.xlu0 %861, %v333
        %v863 = vpop.permute.xlu0 %862
        %v864 = vsel %vm854, %v860, %v828
        %v865 = vsel %vm855, %v860, %v829
        %v866 = vsel %vm856, %v860, %v830
        %v867 = vsel %vm857, %v860, %v831
        %v868 = vsel %vm854, %v863, %v832
        %v869 = vsel %vm855, %v863, %v833
        %v870 = vsel %vm856, %v863, %v834
        %v871 = vsel %vm857, %v863, %v835
        %vm872 = vcmp.eq.s32.totalorder %v617, 7
        %v873 = vsel %vm872, 1, 0
        %v874 = vlaneseq
        %v875 = vshrl.u32 %v874, 7
        %v876 = vsub.s32 0, %v875
        %v877 = vrot.slane %v873, %v876
        %v878 = vlaneseq
        %v879 = vshrl.u32 %v878, 7
        %v880 = vsub.s32 1, %v879
        %v881 = vrot.slane %v873, %v880
        %v882 = vlaneseq
        %v883 = vshrl.u32 %v882, 7
        %v884 = vsub.s32 2, %v883
        %v885 = vrot.slane %v873, %v884
        %v886 = vlaneseq
        %v887 = vshrl.u32 %v886, 7
        %v888 = vsub.s32 3, %v887
        %v889 = vrot.slane %v873, %v888
        %vm890 = vcmp.eq.s32.totalorder %v877, 1
        %vm891 = vcmp.eq.s32.totalorder %v881, 1
        %vm892 = vcmp.eq.s32.totalorder %v885, 1
        %vm893 = vcmp.eq.s32.totalorder %v889, 1
        %894 = vset.pattern.permute.xlu0 7
        %895 = vperm.xlu0 %894, %v332
        %v896 = vpop.permute.xlu0 %895
        %897 = vset.pattern.permute.xlu0 7
        %898 = vperm.xlu0 %897, %v333
        %v899 = vpop.permute.xlu0 %898
        %v900 = vsel %vm890, %v896, %v864
        %v901 = vsel %vm891, %v896, %v865
        %v902 = vsel %vm892, %v896, %v866
        %v903 = vsel %vm893, %v896, %v867
        %v904 = vsel %vm890, %v899, %v868
        %v905 = vsel %vm891, %v899, %v869
        %v906 = vsel %vm892, %v899, %v870
        %v907 = vsel %vm893, %v899, %v871
        %vm908 = vcmp.eq.s32.totalorder %v617, 8
        %v909 = vsel %vm908, 1, 0
        %v910 = vlaneseq
        %v911 = vshrl.u32 %v910, 7
        %v912 = vsub.s32 0, %v911
        %v913 = vrot.slane %v909, %v912
        %v914 = vlaneseq
        %v915 = vshrl.u32 %v914, 7
        %v916 = vsub.s32 1, %v915
        %v917 = vrot.slane %v909, %v916
        %v918 = vlaneseq
        %v919 = vshrl.u32 %v918, 7
        %v920 = vsub.s32 2, %v919
        %v921 = vrot.slane %v909, %v920
        %v922 = vlaneseq
        %v923 = vshrl.u32 %v922, 7
        %v924 = vsub.s32 3, %v923
        %v925 = vrot.slane %v909, %v924
        %vm926 = vcmp.eq.s32.totalorder %v913, 1
        %vm927 = vcmp.eq.s32.totalorder %v917, 1
        %vm928 = vcmp.eq.s32.totalorder %v921, 1
        %vm929 = vcmp.eq.s32.totalorder %v925, 1
        %930 = vset.pattern.permute.xlu0 8
        %931 = vperm.xlu0 %930, %v332
        %v932 = vpop.permute.xlu0 %931
        %933 = vset.pattern.permute.xlu0 8
        %934 = vperm.xlu0 %933, %v333
        %v935 = vpop.permute.xlu0 %934
        %v936 = vsel %vm926, %v932, %v900
        %v937 = vsel %vm927, %v932, %v901
        %v938 = vsel %vm928, %v932, %v902
        %v939 = vsel %vm929, %v932, %v903
        %v940 = vsel %vm926, %v935, %v904
        %v941 = vsel %vm927, %v935, %v905
        %v942 = vsel %vm928, %v935, %v906
        %v943 = vsel %vm929, %v935, %v907
        %vm944 = vcmp.eq.s32.totalorder %v617, 9
        %v945 = vsel %vm944, 1, 0
        %v946 = vlaneseq
        %v947 = vshrl.u32 %v946, 7
        %v948 = vsub.s32 0, %v947
        %v949 = vrot.slane %v945, %v948
        %v950 = vlaneseq
        %v951 = vshrl.u32 %v950, 7
        %v952 = vsub.s32 1, %v951
        %v953 = vrot.slane %v945, %v952
        %v954 = vlaneseq
        %v955 = vshrl.u32 %v954, 7
        %v956 = vsub.s32 2, %v955
        %v957 = vrot.slane %v945, %v956
        %v958 = vlaneseq
        %v959 = vshrl.u32 %v958, 7
        %v960 = vsub.s32 3, %v959
        %v961 = vrot.slane %v945, %v960
        %vm962 = vcmp.eq.s32.totalorder %v949, 1
        %vm963 = vcmp.eq.s32.totalorder %v953, 1
        %vm964 = vcmp.eq.s32.totalorder %v957, 1
        %vm965 = vcmp.eq.s32.totalorder %v961, 1
        %966 = vset.pattern.permute.xlu0 9
        %967 = vperm.xlu0 %966, %v332
        %v968 = vpop.permute.xlu0 %967
        %969 = vset.pattern.permute.xlu0 9
        %970 = vperm.xlu0 %969, %v333
        %v971 = vpop.permute.xlu0 %970
        %v972 = vsel %vm962, %v968, %v936
        %v973 = vsel %vm963, %v968, %v937
        %v974 = vsel %vm964, %v968, %v938
        %v975 = vsel %vm965, %v968, %v939
        %v976 = vsel %vm962, %v971, %v940
        %v977 = vsel %vm963, %v971, %v941
        %v978 = vsel %vm964, %v971, %v942
        %v979 = vsel %vm965, %v971, %v943
        %vm980 = vcmp.eq.s32.totalorder %v617, 10
        %v981 = vsel %vm980, 1, 0
        %v982 = vlaneseq
        %v983 = vshrl.u32 %v982, 7
        %v984 = vsub.s32 0, %v983
        %v985 = vrot.slane %v981, %v984
        %v986 = vlaneseq
        %v987 = vshrl.u32 %v986, 7
        %v988 = vsub.s32 1, %v987
        %v989 = vrot.slane %v981, %v988
        %v990 = vlaneseq
        %v991 = vshrl.u32 %v990, 7
        %v992 = vsub.s32 2, %v991
        %v993 = vrot.slane %v981, %v992
        %v994 = vlaneseq
        %v995 = vshrl.u32 %v994, 7
        %v996 = vsub.s32 3, %v995
        %v997 = vrot.slane %v981, %v996
        %vm998 = vcmp.eq.s32.totalorder %v985, 1
        %vm999 = vcmp.eq.s32.totalorder %v989, 1
        %vm1000 = vcmp.eq.s32.totalorder %v993, 1
        %vm1001 = vcmp.eq.s32.totalorder %v997, 1
        %1002 = vset.pattern.permute.xlu0 10
        %1003 = vperm.xlu0 %1002, %v332
        %v1004 = vpop.permute.xlu0 %1003
        %1005 = vset.pattern.permute.xlu0 10
        %1006 = vperm.xlu0 %1005, %v333
        %v1007 = vpop.permute.xlu0 %1006
        %v1008 = vsel %vm998, %v1004, %v972
        %v1009 = vsel %vm999, %v1004, %v973
        %v1010 = vsel %vm1000, %v1004, %v974
        %v1011 = vsel %vm1001, %v1004, %v975
        %v1012 = vsel %vm998, %v1007, %v976
        %v1013 = vsel %vm999, %v1007, %v977
        %v1014 = vsel %vm1000, %v1007, %v978
        %v1015 = vsel %vm1001, %v1007, %v979
        %vm1016 = vcmp.eq.s32.totalorder %v617, 11
        %v1017 = vsel %vm1016, 1, 0
        %v1018 = vlaneseq
        %v1019 = vshrl.u32 %v1018, 7
        %v1020 = vsub.s32 0, %v1019
        %v1021 = vrot.slane %v1017, %v1020
        %v1022 = vlaneseq
        %v1023 = vshrl.u32 %v1022, 7
        %v1024 = vsub.s32 1, %v1023
        %v1025 = vrot.slane %v1017, %v1024
        %v1026 = vlaneseq
        %v1027 = vshrl.u32 %v1026, 7
        %v1028 = vsub.s32 2, %v1027
        %v1029 = vrot.slane %v1017, %v1028
        %v1030 = vlaneseq
        %v1031 = vshrl.u32 %v1030, 7
        %v1032 = vsub.s32 3, %v1031
        %v1033 = vrot.slane %v1017, %v1032
        %vm1034 = vcmp.eq.s32.totalorder %v1021, 1
        %vm1035 = vcmp.eq.s32.totalorder %v1025, 1
        %vm1036 = vcmp.eq.s32.totalorder %v1029, 1
        %vm1037 = vcmp.eq.s32.totalorder %v1033, 1
        %1038 = vset.pattern.permute.xlu0 11
        %1039 = vperm.xlu0 %1038, %v332
        %v1040 = vpop.permute.xlu0 %1039
        %1041 = vset.pattern.permute.xlu0 11
        %1042 = vperm.xlu0 %1041, %v333
        %v1043 = vpop.permute.xlu0 %1042
        %v1044 = vsel %vm1034, %v1040, %v1008
        %v1045 = vsel %vm1035, %v1040, %v1009
        %v1046 = vsel %vm1036, %v1040, %v1010
        %v1047 = vsel %vm1037, %v1040, %v1011
        %v1048 = vsel %vm1034, %v1043, %v1012
        %v1049 = vsel %vm1035, %v1043, %v1013
        %v1050 = vsel %vm1036, %v1043, %v1014
        %v1051 = vsel %vm1037, %v1043, %v1015
        %v1052 = vlaneseq
        %v1053 = vshrl.u32 %v1052, 7
        %v1054 = vsub.s32 0, %v1053
        %v1055 = vrot.slane %v619, %v1054
        %v1056 = vlaneseq
        %v1057 = vshrl.u32 %v1056, 7
        %v1058 = vsub.s32 1, %v1057
        %v1059 = vrot.slane %v619, %v1058
        %v1060 = vlaneseq
        %v1061 = vshrl.u32 %v1060, 7
        %v1062 = vsub.s32 2, %v1061
        %v1063 = vrot.slane %v619, %v1062
        %v1064 = vlaneseq
        %v1065 = vshrl.u32 %v1064, 7
        %v1066 = vsub.s32 3, %v1065
        %v1067 = vrot.slane %v619, %v1066
        %vm1068 = vcmp.eq.s32.totalorder %v1044, %v1055
        %vm1069 = vcmp.eq.s32.totalorder %v1045, %v1059
        %vm1070 = vcmp.eq.s32.totalorder %v1046, %v1063
        %vm1071 = vcmp.eq.s32.totalorder %v1047, %v1067
        %vm1072 = vcmp.eq.s32.totalorder %v1048, %v1055
        %vm1073 = vcmp.eq.s32.totalorder %v1049, %v1059
        %vm1074 = vcmp.eq.s32.totalorder %v1050, %v1063
        %vm1075 = vcmp.eq.s32.totalorder %v1051, %v1067
        %v1076 = vsel %vm1068, 1.0, 0.0
        %v1077 = vsel %vm1069, 1.0, 0.0
        %v1078 = vsel %vm1070, 1.0, 0.0
        %v1079 = vsel %vm1071, 1.0, 0.0
        %v1080 = vsel %vm1072, 1.0, 0.0
        %v1081 = vsel %vm1073, 1.0, 0.0
        %v1082 = vsel %vm1074, 1.0, 0.0
        %v1083 = vsel %vm1075, 1.0, 0.0
        %v1084 = vpack.c.bf16 %v1080, %v1076
        %v1085 = vpack.c.bf16 %v1081, %v1077
        %v1086 = vpack.c.bf16 %v1082, %v1078
        %v1087 = vpack.c.bf16 %v1083, %v1079
        %v1088 = vld [vmem:[%s4] sm:$0xff]
        %v1089 = vld [vmem:[%s4 + $0x8] sm:$0xf]
        %v1090 = vld [vmem:[%s4 + $0xc] sm:$0xff]
        %v1091 = vld [vmem:[%s4 + $0x14] sm:$0xf]
        %v1092 = vld [vmem:[%s4 + $0x18] sm:$0xff]
        %v1093 = vld [vmem:[%s4 + $0x20] sm:$0xf]
        %v1094 = vld [vmem:[%s4 + $0x24] sm:$0xff]
        %v1095 = vld [vmem:[%s4 + $0x2c] sm:$0xf]
        %v1096 = vld [vmem:[%s4 + $0x30] sm:$0xff]
        %v1097 = vld [vmem:[%s4 + $0x38] sm:$0xf]
        %v1098 = vld [vmem:[%s4 + $0x3c] sm:$0xff]
        %v1099 = vld [vmem:[%s4 + $0x44] sm:$0xf]
        %v1100 = vld [vmem:[%s4 + $0x48] sm:$0xff]
        %v1101 = vld [vmem:[%s4 + $0x50] sm:$0xf]
        %v1102 = vld [vmem:[%s4 + $0x54] sm:$0xff]
        %v1103 = vld [vmem:[%s4 + $0x5c] sm:$0xf]
        %v1104 = vld [vmem:[%s4 + $0x60] sm:$0xff]
        %v1105 = vld [vmem:[%s4 + $0x68] sm:$0xf]
        %v1106 = vld [vmem:[%s4 + $0x6c] sm:$0xff]
        %v1107 = vld [vmem:[%s4 + $0x74] sm:$0xf]
        %v1108 = vld [vmem:[%s4 + $0x78] sm:$0xff]
        %v1109 = vld [vmem:[%s4 + $0x80] sm:$0xf]
        %v1110 = vld [vmem:[%s4 + $0x84] sm:$0xff]
        %v1111 = vld [vmem:[%s4 + $0x8c] sm:$0xf]
        %v1112 = vld [vmem:[%s4 + $0x90] sm:$0xff]
        %v1113 = vld [vmem:[%s4 + $0x98] sm:$0xf]
        %v1114 = vld [vmem:[%s4 + $0x9c] sm:$0xff]
        %v1115 = vld [vmem:[%s4 + $0xa4] sm:$0xf]
        %v1116 = vld [vmem:[%s4 + $0xa8] sm:$0xff]
        %v1117 = vld [vmem:[%s4 + $0xb0] sm:$0xf]
        %v1118 = vld [vmem:[%s4 + $0xb4] sm:$0xff]
        %v1119 = vld [vmem:[%s4 + $0xbc] sm:$0xf]
        %v1120 = vld [vmem:[%s4 + $0xc0] sm:$0xff]
        %v1121 = vld [vmem:[%s4 + $0xc8] sm:$0xf]
        %v1122 = vld [vmem:[%s4 + $0xcc] sm:$0xff]
        %v1123 = vld [vmem:[%s4 + $0xd4] sm:$0xf]
        %v1124 = vld [vmem:[%s4 + $0xd8] sm:$0xff]
        %v1125 = vld [vmem:[%s4 + $0xe0] sm:$0xf]
        %v1126 = vld [vmem:[%s4 + $0xe4] sm:$0xff]
        %v1127 = vld [vmem:[%s4 + $0xec] sm:$0xf]
        %v1128 = vld [vmem:[%s4 + $0xf0] sm:$0xff]
        %v1129 = vld [vmem:[%s4 + $0xf8] sm:$0xf]
        %v1130 = vld [vmem:[%s4 + $0xfc] sm:$0xff]
        %v1131 = vld [vmem:[%s4 + $0x104] sm:$0xf]
        %v1132 = vld [vmem:[%s4 + $0x108] sm:$0xff]
        %v1133 = vld [vmem:[%s4 + $0x110] sm:$0xf]
        %v1134 = vld [vmem:[%s4 + $0x114] sm:$0xff]
        %v1135 = vld [vmem:[%s4 + $0x11c] sm:$0xf]
        %v1136 = vld [vmem:[%s4 + $0x120] sm:$0xff]
        %v1137 = vld [vmem:[%s4 + $0x128] sm:$0xf]
        %v1138 = vld [vmem:[%s4 + $0x12c] sm:$0xff]
        %v1139 = vld [vmem:[%s4 + $0x134] sm:$0xf]
        %v1140 = vld [vmem:[%s4 + $0x138] sm:$0xff]
        %v1141 = vld [vmem:[%s4 + $0x140] sm:$0xf]
        %v1142 = vld [vmem:[%s4 + $0x144] sm:$0xff]
        %v1143 = vld [vmem:[%s4 + $0x14c] sm:$0xf]
        %v1144 = vld [vmem:[%s4 + $0x150] sm:$0xff]
        %v1145 = vld [vmem:[%s4 + $0x158] sm:$0xf]
        %v1146 = vld [vmem:[%s4 + $0x15c] sm:$0xff]
        %v1147 = vld [vmem:[%s4 + $0x164] sm:$0xf]
        %v1148 = vld [vmem:[%s4 + $0x168] sm:$0xff]
        %v1149 = vld [vmem:[%s4 + $0x170] sm:$0xf]
        %v1150 = vld [vmem:[%s4 + $0x174] sm:$0xff]
        %v1151 = vld [vmem:[%s4 + $0x17c] sm:$0xf]
        %v1152 = vld [vmem:[%s4 + $0x180] sm:$0xff]
        %v1153 = vld [vmem:[%s4 + $0x188] sm:$0xf]
        %v1154 = vld [vmem:[%s4 + $0x18c] sm:$0xff]
        %v1155 = vld [vmem:[%s4 + $0x194] sm:$0xf]
        %v1156 = vld [vmem:[%s4 + $0x198] sm:$0xff]
        %v1157 = vld [vmem:[%s4 + $0x1a0] sm:$0xf]
        %v1158 = vld [vmem:[%s4 + $0x1a4] sm:$0xff]
        %v1159 = vld [vmem:[%s4 + $0x1ac] sm:$0xf]
        %v1160 = vld [vmem:[%s4 + $0x1b0] sm:$0xff]
        %v1161 = vld [vmem:[%s4 + $0x1b8] sm:$0xf]
        %v1162 = vld [vmem:[%s4 + $0x1bc] sm:$0xff]
        %v1163 = vld [vmem:[%s4 + $0x1c4] sm:$0xf]
        %v1164 = vld [vmem:[%s4 + $0x1c8] sm:$0xff]
        %v1165 = vld [vmem:[%s4 + $0x1d0] sm:$0xf]
        %v1166 = vld [vmem:[%s4 + $0x1d4] sm:$0xff]
        %v1167 = vld [vmem:[%s4 + $0x1dc] sm:$0xf]
        %v1168 = vld [vmem:[%s4 + $0x1e0] sm:$0xff]
        %v1169 = vld [vmem:[%s4 + $0x1e8] sm:$0xf]
        %v1170 = vld [vmem:[%s4 + $0x1ec] sm:$0xff]
        %v1171 = vld [vmem:[%s4 + $0x1f4] sm:$0xf]
        %v1172 = vld [vmem:[%s4 + $0x1f8] sm:$0xff]
        %v1173 = vld [vmem:[%s4 + $0x200] sm:$0xf]
        %v1174 = vld [vmem:[%s4 + $0x204] sm:$0xff]
        %v1175 = vld [vmem:[%s4 + $0x20c] sm:$0xf]
        %v1176 = vld [vmem:[%s4 + $0x210] sm:$0xff]
        %v1177 = vld [vmem:[%s4 + $0x218] sm:$0xf]
        %1182 = vrot.lane.b32.xlu0 %v1084, 12
        %v1183 = vpop.permute.xlu0 %1182
        %1184 = vrot.lane.b32.xlu0 %v1085, 12
        %v1185 = vpop.permute.xlu0 %1184
        %1186 = vrot.lane.b32.xlu0 %v1086, 12
        %v1187 = vpop.permute.xlu0 %1186
        %1188 = vrot.lane.b32.xlu0 %v1087, 12
        %v1189 = vpop.permute.xlu0 %1188
        %vm1190 = vcmask 97280
        %v1191 = vsel %vm1190, %v1183, %v1185
        %v1192 = vsel %vm1190, %v1185, %v1187
        %v1193 = vsel %vm1190, %v1187, %v1189
        %v1286 = vunpack.c.l.b16 %v1088
        %v1287 = vunpack.c.h.b16 %v1088
        %v1288 = vunpack.c.l.b16 %v1089
        %v1289 = vunpack.c.l.b16 %v1090
        %v1290 = vunpack.c.h.b16 %v1090
        %v1291 = vunpack.c.l.b16 %v1091
        %v1292 = vunpack.c.l.b16 %v1092
        %v1293 = vunpack.c.h.b16 %v1092
        %v1294 = vunpack.c.l.b16 %v1093
        %v1295 = vunpack.c.l.b16 %v1094
        %v1296 = vunpack.c.h.b16 %v1094
        %v1297 = vunpack.c.l.b16 %v1095
        %v1298 = vunpack.c.l.b16 %v1096
        %v1299 = vunpack.c.h.b16 %v1096
        %v1300 = vunpack.c.l.b16 %v1097
        %v1301 = vunpack.c.l.b16 %v1098
        %v1302 = vunpack.c.h.b16 %v1098
        %v1303 = vunpack.c.l.b16 %v1099
        %v1304 = vunpack.c.l.b16 %v1100
        %v1305 = vunpack.c.h.b16 %v1100
        %v1306 = vunpack.c.l.b16 %v1101
        %v1307 = vunpack.c.l.b16 %v1102
        %v1308 = vunpack.c.h.b16 %v1102
        %v1309 = vunpack.c.l.b16 %v1103
        %v1310 = vunpack.c.l.b16 %v1104
        %v1311 = vunpack.c.h.b16 %v1104
        %v1312 = vunpack.c.l.b16 %v1105
        %v1313 = vunpack.c.l.b16 %v1106
        %v1314 = vunpack.c.h.b16 %v1106
        %v1315 = vunpack.c.l.b16 %v1107
        %v1316 = vunpack.c.l.b16 %v1108
        %v1317 = vunpack.c.h.b16 %v1108
        %v1318 = vunpack.c.l.b16 %v1109
        %v1319 = vunpack.c.l.b16 %v1110
        %v1320 = vunpack.c.h.b16 %v1110
        %v1321 = vunpack.c.l.b16 %v1111
        %v1322 = vunpack.c.l.b16 %v1112
        %v1323 = vunpack.c.h.b16 %v1112
        %v1324 = vunpack.c.l.b16 %v1113
        %v1325 = vunpack.c.l.b16 %v1114
        %v1326 = vunpack.c.h.b16 %v1114
        %v1327 = vunpack.c.l.b16 %v1115
        %v1328 = vunpack.c.l.b16 %v1116
        %v1329 = vunpack.c.h.b16 %v1116
        %v1330 = vunpack.c.l.b16 %v1117
        %v1331 = vunpack.c.l.b16 %v1118
        %v1332 = vunpack.c.h.b16 %v1118
        %v1333 = vunpack.c.l.b16 %v1119
        %v1334 = vunpack.c.l.b16 %v1120
        %v1335 = vunpack.c.h.b16 %v1120
        %v1336 = vunpack.c.l.b16 %v1121
        %v1337 = vunpack.c.l.b16 %v1122
        %v1338 = vunpack.c.h.b16 %v1122
        %v1339 = vunpack.c.l.b16 %v1123
        %v1340 = vunpack.c.l.b16 %v1124
        %v1341 = vunpack.c.h.b16 %v1124
        %v1342 = vunpack.c.l.b16 %v1125
        %v1343 = vunpack.c.l.b16 %v1126
        %v1344 = vunpack.c.h.b16 %v1126
        %v1345 = vunpack.c.l.b16 %v1127
        %v1346 = vunpack.c.l.b16 %v1128
        %v1347 = vunpack.c.h.b16 %v1128
        %v1348 = vunpack.c.l.b16 %v1129
        %v1349 = vunpack.c.l.b16 %v1130
        %v1350 = vunpack.c.h.b16 %v1130
        %v1351 = vunpack.c.l.b16 %v1131
        %v1352 = vunpack.c.l.b16 %v1132
        %v1353 = vunpack.c.h.b16 %v1132
        %v1354 = vunpack.c.l.b16 %v1133
        %v1355 = vunpack.c.l.b16 %v1134
        %v1356 = vunpack.c.h.b16 %v1134
        %v1357 = vunpack.c.l.b16 %v1135
        %v1358 = vunpack.c.l.b16 %v1136
        %v1359 = vunpack.c.h.b16 %v1136
        %v1360 = vunpack.c.l.b16 %v1137
        %v1361 = vunpack.c.l.b16 %v1138
        %v1362 = vunpack.c.h.b16 %v1138
        %v1363 = vunpack.c.l.b16 %v1139
        %v1364 = vunpack.c.l.b16 %v1140
        %v1365 = vunpack.c.h.b16 %v1140
        %v1366 = vunpack.c.l.b16 %v1141
        %v1367 = vunpack.c.l.b16 %v1142
        %v1368 = vunpack.c.h.b16 %v1142
        %v1369 = vunpack.c.l.b16 %v1143
        %v1370 = vunpack.c.l.b16 %v1144
        %v1371 = vunpack.c.h.b16 %v1144
        %v1372 = vunpack.c.l.b16 %v1145
        %v1373 = vunpack.c.l.b16 %v1146
        %v1374 = vunpack.c.h.b16 %v1146
        %v1375 = vunpack.c.l.b16 %v1147
        %v1376 = vunpack.c.l.b16 %v1148
        %v1377 = vunpack.c.h.b16 %v1148
        %v1378 = vunpack.c.l.b16 %v1149
        %v1379 = vunpack.c.l.b16 %v1150
        %v1380 = vunpack.c.h.b16 %v1150
        %v1381 = vunpack.c.l.b16 %v1151
        %v1382 = vunpack.c.l.b16 %v1152
        %v1383 = vunpack.c.h.b16 %v1152
        %v1384 = vunpack.c.l.b16 %v1153
        %v1385 = vunpack.c.l.b16 %v1154
        %v1386 = vunpack.c.h.b16 %v1154
        %v1387 = vunpack.c.l.b16 %v1155
        %v1388 = vunpack.c.l.b16 %v1156
        %v1389 = vunpack.c.h.b16 %v1156
        %v1390 = vunpack.c.l.b16 %v1157
        %v1391 = vunpack.c.l.b16 %v1158
        %v1392 = vunpack.c.h.b16 %v1158
        %v1393 = vunpack.c.l.b16 %v1159
        %v1394 = vunpack.c.l.b16 %v1160
        %v1395 = vunpack.c.h.b16 %v1160
        %v1396 = vunpack.c.l.b16 %v1161
        %v1397 = vunpack.c.l.b16 %v1162
        %v1398 = vunpack.c.h.b16 %v1162
        %v1399 = vunpack.c.l.b16 %v1163
        %v1400 = vunpack.c.l.b16 %v1164
        %v1401 = vunpack.c.h.b16 %v1164
        %v1402 = vunpack.c.l.b16 %v1165
        %v1403 = vunpack.c.l.b16 %v1166
        %v1404 = vunpack.c.h.b16 %v1166
        %v1405 = vunpack.c.l.b16 %v1167
        %v1406 = vunpack.c.l.b16 %v1168
        %v1407 = vunpack.c.h.b16 %v1168
        %v1408 = vunpack.c.l.b16 %v1169
        %v1409 = vunpack.c.l.b16 %v1170
        %v1410 = vunpack.c.h.b16 %v1170
        %v1411 = vunpack.c.l.b16 %v1171
        %v1412 = vunpack.c.l.b16 %v1172
        %v1413 = vunpack.c.h.b16 %v1172
        %v1414 = vunpack.c.l.b16 %v1173
        %v1415 = vunpack.c.l.b16 %v1174
        %v1416 = vunpack.c.h.b16 %v1174
        %v1417 = vunpack.c.l.b16 %v1175
        %v1418 = vunpack.c.l.b16 %v1176
        %v1419 = vunpack.c.h.b16 %v1176
        %v1420 = vunpack.c.l.b16 %v1177
        %v1421 = vpack.c.b16 %v1289, %v1286
        %v1422 = vpack.c.b16 %v1290, %v1287
        %v1423 = vpack.c.b16 %v1291, %v1288
        %v1424 = vpack.c.b16 %v1295, %v1292
        %v1425 = vpack.c.b16 %v1296, %v1293
        %v1426 = vpack.c.b16 %v1297, %v1294
        %v1427 = vpack.c.b16 %v1301, %v1298
        %v1428 = vpack.c.b16 %v1302, %v1299
        %v1429 = vpack.c.b16 %v1303, %v1300
        %v1430 = vpack.c.b16 %v1307, %v1304
        %v1431 = vpack.c.b16 %v1308, %v1305
        %v1432 = vpack.c.b16 %v1309, %v1306
        %v1433 = vpack.c.b16 %v1313, %v1310
        %v1434 = vpack.c.b16 %v1314, %v1311
        %v1435 = vpack.c.b16 %v1315, %v1312
        %v1436 = vpack.c.b16 %v1319, %v1316
        %v1437 = vpack.c.b16 %v1320, %v1317
        %v1438 = vpack.c.b16 %v1321, %v1318
        %v1439 = vpack.c.b16 %v1325, %v1322
        %v1440 = vpack.c.b16 %v1326, %v1323
        %v1441 = vpack.c.b16 %v1327, %v1324
        %v1442 = vpack.c.b16 %v1331, %v1328
        %v1443 = vpack.c.b16 %v1332, %v1329
        %v1444 = vpack.c.b16 %v1333, %v1330
        %v1445 = vpack.c.b16 %v1337, %v1334
        %v1446 = vpack.c.b16 %v1338, %v1335
        %v1447 = vpack.c.b16 %v1339, %v1336
        %v1448 = vpack.c.b16 %v1343, %v1340
        %v1449 = vpack.c.b16 %v1344, %v1341
        %v1450 = vpack.c.b16 %v1345, %v1342
        %v1451 = vpack.c.b16 %v1349, %v1346
        %v1452 = vpack.c.b16 %v1350, %v1347
        %v1453 = vpack.c.b16 %v1351, %v1348
        %v1454 = vpack.c.b16 %v1355, %v1352
        %v1455 = vpack.c.b16 %v1356, %v1353
        %v1456 = vpack.c.b16 %v1357, %v1354
        %v1457 = vpack.c.b16 %v1361, %v1358
        %v1458 = vpack.c.b16 %v1362, %v1359
        %v1459 = vpack.c.b16 %v1363, %v1360
        %v1460 = vpack.c.b16 %v1367, %v1364
        %v1461 = vpack.c.b16 %v1368, %v1365
        %v1462 = vpack.c.b16 %v1369, %v1366
        %v1463 = vpack.c.b16 %v1373, %v1370
        %v1464 = vpack.c.b16 %v1374, %v1371
        %v1465 = vpack.c.b16 %v1375, %v1372
        %v1466 = vpack.c.b16 %v1379, %v1376
        %v1467 = vpack.c.b16 %v1380, %v1377
        %v1468 = vpack.c.b16 %v1381, %v1378
        %v1469 = vpack.c.b16 %v1385, %v1382
        %v1470 = vpack.c.b16 %v1386, %v1383
        %v1471 = vpack.c.b16 %v1387, %v1384
        %v1472 = vpack.c.b16 %v1391, %v1388
        %v1473 = vpack.c.b16 %v1392, %v1389
        %v1474 = vpack.c.b16 %v1393, %v1390
        %v1475 = vpack.c.b16 %v1397, %v1394
        %v1476 = vpack.c.b16 %v1398, %v1395
        %v1477 = vpack.c.b16 %v1399, %v1396
        %v1478 = vpack.c.b16 %v1403, %v1400
        %v1479 = vpack.c.b16 %v1404, %v1401
        %v1480 = vpack.c.b16 %v1405, %v1402
        %v1481 = vpack.c.b16 %v1409, %v1406
        %v1482 = vpack.c.b16 %v1410, %v1407
        %v1483 = vpack.c.b16 %v1411, %v1408
        %v1484 = vpack.c.b16 %v1415, %v1412
        %v1485 = vpack.c.b16 %v1416, %v1413
        %v1486 = vpack.c.b16 %v1417, %v1414
        %v1487 = vpack.c.b16 %v1418, %v1418
        %v1488 = vpack.c.b16 %v1419, %v1419
        %v1489 = vpack.c.b16 %v1420, %v1420
        %vm1556 = vcmask 850944
        %v1558 = vsel %vm1556, %v1193, 0
        %vm1560 = vcmask 1043456
        %v1562 = vsel %vm1560, %v1487, 0
        %v1565 = vsel %vm1560, %v1488, 0
        %v1568 = vsel %vm1560, %v1489, 0
        %1570 = vmatprep.subr.bf16.mxu0 %v1422
        %1571 = vmatpush1.bf16.msra.mxu0 %v1421
        %1572 = vmatprep.subr.bf16.mxu0 %v1425
        %1573 = vmatpush1.bf16.msra.mxu0 %v1424
        %1574 = vmatprep.subr.bf16.mxu0 %v1428
        %1575 = vmatpush1.bf16.msra.mxu0 %v1427
        %1576 = vmatprep.subr.bf16.mxu0 %v1431
        %1577 = vmatpush1.bf16.msra.mxu0 %v1430
        %1578 = vmatprep.subr.bf16.mxu0 %v1434
        %1579 = vmatpush1.bf16.msra.mxu0 %v1433
        %1580 = vmatprep.subr.bf16.mxu0 %v1437
        %1581 = vmatpush1.bf16.msra.mxu0 %v1436
        %1582 = vmatprep.subr.bf16.mxu0 %v1440
        %1583 = vmatpush1.bf16.msra.mxu0 %v1439
        %1584 = vmatprep.subr.bf16.mxu0 %v1443
        %1585 = vmatpush1.bf16.msra.mxu0 %v1442
        %1586 = vmatprep.subr.bf16.mxu0 %v1446
        %1587 = vmatpush1.bf16.msra.mxu0 %v1445
        %1588 = vmatprep.subr.bf16.mxu0 %v1449
        %1589 = vmatpush1.bf16.msra.mxu0 %v1448
        %1590 = vmatprep.subr.bf16.mxu0 %v1452
        %1591 = vmatpush1.bf16.msra.mxu0 %v1451
        %1592 = vmatprep.subr.bf16.mxu0 %v1455
        %1593 = vmatpush1.bf16.msra.mxu0 %v1454
        %1594 = vmatprep.subr.bf16.mxu0 %v1458
        %1595 = vmatpush1.bf16.msra.mxu0 %v1457
        %1596 = vmatprep.subr.bf16.mxu0 %v1461
        %1597 = vmatpush1.bf16.msra.mxu0 %v1460
        %1598 = vmatprep.subr.bf16.mxu0 %v1464
        %1599 = vmatpush1.bf16.msra.mxu0 %v1463
        %1600 = vmatprep.subr.bf16.mxu0 %v1467
        %1601 = vmatpush1.bf16.msra.mxu0 %v1466
        %1602 = vmatprep.mubr.bf16.mxu0 %v1192
        %1603 = vmatmul.mubr.bf16.gmra.mrb[0].mxu0 %v1191
        %v1604 = vpop.f32.mrb[0].mxu0
        %v1605 = vadd.f32 0.0, %v1604
        %v1606 = vpop.f32.mrb[0].mxu0
        %v1607 = vadd.f32 0.0, %v1606
        %v1608 = vpop.f32.mrb[0].mxu0
        %v1609 = vadd.f32 0.0, %v1608
        %v1610 = vpop.f32.mrb[0].mxu0
        %v1611 = vadd.f32 0.0, %v1610
        %1612 = vdwg.mxu0
        %1613 = vmatprep.subr.bf16.mxu0 %v1470
        %1614 = vmatpush1.bf16.msra.mxu0 %v1469
        %1615 = vmatprep.subr.bf16.mxu0 %v1473
        %1616 = vmatpush1.bf16.msra.mxu0 %v1472
        %1617 = vmatprep.subr.bf16.mxu0 %v1476
        %1618 = vmatpush1.bf16.msra.mxu0 %v1475
        %1619 = vmatprep.subr.bf16.mxu0 %v1479
        %1620 = vmatpush1.bf16.msra.mxu0 %v1478
        %1621 = vmatprep.subr.bf16.mxu0 %v1482
        %1622 = vmatpush1.bf16.msra.mxu0 %v1481
        %1623 = vmatprep.subr.bf16.mxu0 %v1485
        %1624 = vmatpush1.bf16.msra.mxu0 %v1484
        %1625 = vmatprep.subr.bf16.mxu0 %v1565
        %1626 = vmatpush1.bf16.msra.mxu0 %v1562
        %1627 = vmatprep.subr.bf16.mxu0 0
        %1628 = vmatpush1.bf16.msra.mxu0 0
        %1629 = vmatprep.subr.bf16.mxu0 0
        %1630 = vmatpush1.bf16.msra.mxu0 0
        %1631 = vmatprep.subr.bf16.mxu0 0
        %1632 = vmatpush1.bf16.msra.mxu0 0
        %1633 = vmatprep.subr.bf16.mxu0 0
        %1634 = vmatpush1.bf16.msra.mxu0 0
        %1635 = vmatprep.subr.bf16.mxu0 0
        %1636 = vmatpush1.bf16.msra.mxu0 0
        %1637 = vmatprep.subr.bf16.mxu0 0
        %1638 = vmatpush1.bf16.msra.mxu0 0
        %1639 = vmatprep.subr.bf16.mxu0 0
        %1640 = vmatpush1.bf16.msra.mxu0 0
        %1641 = vmatprep.subr.bf16.mxu0 0
        %1642 = vmatpush1.bf16.msra.mxu0 0
        %1643 = vmatprep.subr.bf16.mxu0 0
        %1644 = vmatpush1.bf16.msra.mxu0 0
        %1645 = vmatprep.mubr.bf16.mxu0 0
        %1646 = vmatmul.mubr.bf16.gmra.mrb[0].mxu0 %v1558
        %v1647 = vpop.f32.mrb[0].mxu0
        %v1648 = vadd.f32 %v1605, %v1647
        %v1649 = vpop.f32.mrb[0].mxu0
        %v1650 = vadd.f32 %v1607, %v1649
        %v1651 = vpop.f32.mrb[0].mxu0
        %v1652 = vadd.f32 %v1609, %v1651
        %v1653 = vpop.f32.mrb[0].mxu0
        %v1654 = vadd.f32 %v1611, %v1653
        %1655 = vdwg.mxu0
        %1656 = vmatprep.subr.bf16.mxu0 0
        %1657 = vmatpush1.bf16.msra.mxu0 %v1423
        %1658 = vmatprep.subr.bf16.mxu0 0
        %1659 = vmatpush1.bf16.msra.mxu0 %v1426
        %1660 = vmatprep.subr.bf16.mxu0 0
        %1661 = vmatpush1.bf16.msra.mxu0 %v1429
        %1662 = vmatprep.subr.bf16.mxu0 0
        %1663 = vmatpush1.bf16.msra.mxu0 %v1432
        %1664 = vmatprep.subr.bf16.mxu0 0
        %1665 = vmatpush1.bf16.msra.mxu0 %v1435
        %1666 = vmatprep.subr.bf16.mxu0 0
        %1667 = vmatpush1.bf16.msra.mxu0 %v1438
        %1668 = vmatprep.subr.bf16.mxu0 0
        %1669 = vmatpush1.bf16.msra.mxu0 %v1441
        %1670 = vmatprep.subr.bf16.mxu0 0
        %1671 = vmatpush1.bf16.msra.mxu0 %v1444
        %1672 = vmatprep.subr.bf16.mxu0 0
        %1673 = vmatpush1.bf16.msra.mxu0 %v1447
        %1674 = vmatprep.subr.bf16.mxu0 0
        %1675 = vmatpush1.bf16.msra.mxu0 %v1450
        %1676 = vmatprep.subr.bf16.mxu0 0
        %1677 = vmatpush1.bf16.msra.mxu0 %v1453
        %1678 = vmatprep.subr.bf16.mxu0 0
        %1679 = vmatpush1.bf16.msra.mxu0 %v1456
        %1680 = vmatprep.subr.bf16.mxu0 0
        %1681 = vmatpush1.bf16.msra.mxu0 %v1459
        %1682 = vmatprep.subr.bf16.mxu0 0
        %1683 = vmatpush1.bf16.msra.mxu0 %v1462
        %1684 = vmatprep.subr.bf16.mxu0 0
        %1685 = vmatpush1.bf16.msra.mxu0 %v1465
        %1686 = vmatprep.subr.bf16.mxu0 0
        %1687 = vmatpush1.bf16.msra.mxu0 %v1468
        %1688 = vmatprep.mubr.bf16.mxu0 %v1192
        %1689 = vmatmul.mubr.bf16.gmra.mrb[0].mxu0 %v1191
        %v1690 = vpop.f32.mrb[0].mxu0
        %v1691 = vadd.f32 0.0, %v1690
        %v1692 = vpop.f32.mrb[0].mxu0
        %v1693 = vpop.f32.mrb[0].mxu0
        %v1694 = vadd.f32 0.0, %v1693
        %v1695 = vpop.f32.mrb[0].mxu0
        %1696 = vdwg.mxu0
        %1697 = vmatprep.subr.bf16.mxu0 0
        %1698 = vmatpush1.bf16.msra.mxu0 %v1471
        %1699 = vmatprep.subr.bf16.mxu0 0
        %1700 = vmatpush1.bf16.msra.mxu0 %v1474
        %1701 = vmatprep.subr.bf16.mxu0 0
        %1702 = vmatpush1.bf16.msra.mxu0 %v1477
        %1703 = vmatprep.subr.bf16.mxu0 0
        %1704 = vmatpush1.bf16.msra.mxu0 %v1480
        %1705 = vmatprep.subr.bf16.mxu0 0
        %1706 = vmatpush1.bf16.msra.mxu0 %v1483
        %1707 = vmatprep.subr.bf16.mxu0 0
        %1708 = vmatpush1.bf16.msra.mxu0 %v1486
        %1709 = vmatprep.subr.bf16.mxu0 0
        %1710 = vmatpush1.bf16.msra.mxu0 %v1568
        %1711 = vmatprep.subr.bf16.mxu0 0
        %1712 = vmatpush1.bf16.msra.mxu0 0
        %1713 = vmatprep.subr.bf16.mxu0 0
        %1714 = vmatpush1.bf16.msra.mxu0 0
        %1715 = vmatprep.subr.bf16.mxu0 0
        %1716 = vmatpush1.bf16.msra.mxu0 0
        %1717 = vmatprep.subr.bf16.mxu0 0
        %1718 = vmatpush1.bf16.msra.mxu0 0
        %1719 = vmatprep.subr.bf16.mxu0 0
        %1720 = vmatpush1.bf16.msra.mxu0 0
        %1721 = vmatprep.subr.bf16.mxu0 0
        %1722 = vmatpush1.bf16.msra.mxu0 0
        %1723 = vmatprep.subr.bf16.mxu0 0
        %1724 = vmatpush1.bf16.msra.mxu0 0
        %1725 = vmatprep.subr.bf16.mxu0 0
        %1726 = vmatpush1.bf16.msra.mxu0 0
        %1727 = vmatprep.subr.bf16.mxu0 0
        %1728 = vmatpush1.bf16.msra.mxu0 0
        %1729 = vmatprep.mubr.bf16.mxu0 0
        %1730 = vmatmul.mubr.bf16.gmra.mrb[0].mxu0 %v1558
        %v1731 = vpop.f32.mrb[0].mxu0
        %v1732 = vadd.f32 %v1691, %v1731
        %v1733 = vpop.f32.mrb[0].mxu0
        %v1734 = vpop.f32.mrb[0].mxu0
        %v1735 = vadd.f32 %v1694, %v1734
        %v1736 = vpop.f32.mrb[0].mxu0
        %1737 = vdwg.mxu0
        %1740 = vrot.lane.b32.xlu0 %v1648, 96
        %v1741 = vpop.permute.xlu0 %1740
        %1742 = vrot.lane.b32.xlu0 %v1652, 96
        %v1743 = vpop.permute.xlu0 %1742
        %v1746 = vmax.f32 %v1648, %v1741
        %v1747 = vmax.f32 %v1652, %v1743
        %1748 = vrot.lane.b32.xlu0 %v1648, 64
        %v1749 = vpop.permute.xlu0 %1748
        %1750 = vrot.lane.b32.xlu0 %v1652, 64
        %v1751 = vpop.permute.xlu0 %1750
        %v1754 = vmax.f32 %v1746, %v1749
        %v1755 = vmax.f32 %v1747, %v1751
        %1756 = vrot.lane.b32.xlu0 %v1648, 32
        %v1757 = vpop.permute.xlu0 %1756
        %1758 = vrot.lane.b32.xlu0 %v1652, 32
        %v1759 = vpop.permute.xlu0 %1758
        %v1762 = vmax.f32 %v1754, %v1757
        %v1763 = vmax.f32 %v1755, %v1759
        %v1764 = vmax.f32 %v1762, %v1650
        %v1765 = vmax.f32 %v1763, %v1654
        %1768 = vrot.lane.b32.xlu0 %v1650, 96
        %v1769 = vpop.permute.xlu0 %1768
        %1770 = vrot.lane.b32.xlu0 %v1654, 96
        %v1771 = vpop.permute.xlu0 %1770
        %v1774 = vmax.f32 %v1764, %v1769
        %v1775 = vmax.f32 %v1765, %v1771
        %1776 = vrot.lane.b32.xlu0 %v1650, 64
        %v1777 = vpop.permute.xlu0 %1776
        %1778 = vrot.lane.b32.xlu0 %v1654, 64
        %v1779 = vpop.permute.xlu0 %1778
        %v1782 = vmax.f32 %v1774, %v1777
        %v1783 = vmax.f32 %v1775, %v1779
        %1784 = vrot.lane.b32.xlu0 %v1650, 32
        %v1785 = vpop.permute.xlu0 %1784
        %1786 = vrot.lane.b32.xlu0 %v1654, 32
        %v1787 = vpop.permute.xlu0 %1786
        %v1790 = vmax.f32 %v1782, %v1785
        %v1791 = vmax.f32 %v1783, %v1787
        %v1792 = vmax.f32 %v1790, %v1732
        %v1793 = vmax.f32 %v1791, %v1735
        %1796 = vrot.lane.b32.xlu0 %v1732, 96
        %v1797 = vpop.permute.xlu0 %1796
        %1798 = vrot.lane.b32.xlu0 %v1735, 96
        %v1799 = vpop.permute.xlu0 %1798
        %v1802 = vmax.f32 %v1792, %v1797
        %v1803 = vmax.f32 %v1793, %v1799
        %v1804 = vld [vmem:[%s7] sm:$0x1]
        %v1805 = vlaneseq
        %v1806 = vshrl.u32 %v1805, 7
        %v1807 = vsub.s32 0, %v1806
        %v1808 = vrot.slane %v1804, %v1807
        %v1809 = vadd.f32 %v1802, %v1808
        %v1810 = vadd.f32 %v1803, %v1808
        %v1811 = vpack.c.bf16 %v1810, %v1809
        %v1812 = vld [vmem:[%s5] sm:$0xf]
        %v1813 = vld [vmem:[%s5 + $0x4] sm:$0xf]
        %v1814 = vld [vmem:[%s5 + $0x8] sm:$0xf]
        %v1815 = vld [vmem:[%s5 + $0xc] sm:$0xf]
        %v1820 = vunpack.c.l.b16 %v1812
        %v1821 = vunpack.c.l.b16 %v1813
        %v1822 = vunpack.c.l.b16 %v1814
        %v1823 = vunpack.c.l.b16 %v1815
        %v1824 = vpack.c.b16 %v1821, %v1820
        %v1825 = vpack.c.b16 %v1823, %v1822
        %vm1828 = vcmask 261120
        %v1830 = vsel %vm1828, %v1811, 0
        %1832 = vmatprep.subr.bf16.mxu0 0
        %1833 = vmatpush1.bf16.msra.mxu0 %v1824
        %1834 = vmatprep.subr.bf16.mxu0 0
        %1835 = vmatpush1.bf16.msra.mxu0 %v1825
        %1836 = vmatprep.subr.bf16.mxu0 0
        %1837 = vmatpush1.bf16.msra.mxu0 0
        %1838 = vmatprep.subr.bf16.mxu0 0
        %1839 = vmatpush1.bf16.msra.mxu0 0
        %1840 = vmatprep.subr.bf16.mxu0 0
        %1841 = vmatpush1.bf16.msra.mxu0 0
        %1842 = vmatprep.subr.bf16.mxu0 0
        %1843 = vmatpush1.bf16.msra.mxu0 0
        %1844 = vmatprep.subr.bf16.mxu0 0
        %1845 = vmatpush1.bf16.msra.mxu0 0
        %1846 = vmatprep.subr.bf16.mxu0 0
        %1847 = vmatpush1.bf16.msra.mxu0 0
        %1848 = vmatprep.subr.bf16.mxu0 0
        %1849 = vmatpush1.bf16.msra.mxu0 0
        %1850 = vmatprep.subr.bf16.mxu0 0
        %1851 = vmatpush1.bf16.msra.mxu0 0
        %1852 = vmatprep.subr.bf16.mxu0 0
        %1853 = vmatpush1.bf16.msra.mxu0 0
        %1854 = vmatprep.subr.bf16.mxu0 0
        %1855 = vmatpush1.bf16.msra.mxu0 0
        %1856 = vmatprep.subr.bf16.mxu0 0
        %1857 = vmatpush1.bf16.msra.mxu0 0
        %1858 = vmatprep.subr.bf16.mxu0 0
        %1859 = vmatpush1.bf16.msra.mxu0 0
        %1860 = vmatprep.subr.bf16.mxu0 0
        %1861 = vmatpush1.bf16.msra.mxu0 0
        %1862 = vmatprep.subr.bf16.mxu0 0
        %1863 = vmatpush1.bf16.msra.mxu0 0
        %1864 = vmatprep.mubr.bf16.mxu0 0
        %1865 = vmatmul.mubr.bf16.gmra.mrb[0].mxu0 %v1830
        %v1866 = vpop.f32.mrb[0].mxu0
        %v1867 = vadd.f32 0.0, %v1866
        %v1868 = vpop.f32.mrb[0].mxu0
        %v1869 = vpop.f32.mrb[0].mxu0
        %v1870 = vadd.f32 0.0, %v1869
        %v1871 = vpop.f32.mrb[0].mxu0
        %1872 = vdwg.mxu0
        %v1936 = vunpack.c.l.b16 %v553
        %v1937 = vunpack.c.l.b16 %v554
        %v1938 = vunpack.c.l.b16 %v555
        %v1939 = vunpack.c.l.b16 %v556
        %v1940 = vunpack.c.l.b16 %v557
        %v1941 = vunpack.c.l.b16 %v558
        %v1942 = vunpack.c.l.b16 %v559
        %v1943 = vunpack.c.l.b16 %v560
        %v1944 = vunpack.c.l.b16 %v561
        %v1945 = vunpack.c.l.b16 %v562
        %v1946 = vunpack.c.l.b16 %v563
        %v1947 = vunpack.c.l.b16 %v564
        %v1948 = vunpack.c.l.b16 %v565
        %v1949 = vunpack.c.l.b16 %v566
        %v1950 = vunpack.c.l.b16 %v567
        %v1951 = vunpack.c.l.b16 %v568
        %v1952 = vunpack.c.l.b16 %v569
        %v1953 = vunpack.c.l.b16 %v570
        %v1954 = vunpack.c.l.b16 %v571
        %v1955 = vunpack.c.l.b16 %v572
        %v1956 = vunpack.c.l.b16 %v573
        %v1957 = vunpack.c.l.b16 %v574
        %v1958 = vunpack.c.l.b16 %v575
        %v1959 = vunpack.c.l.b16 %v576
        %v1960 = vunpack.c.l.b16 %v577
        %v1961 = vunpack.c.l.b16 %v578
        %v1962 = vunpack.c.l.b16 %v579
        %v1963 = vunpack.c.l.b16 %v580
        %v1964 = vunpack.c.l.b16 %v581
        %v1965 = vunpack.c.l.b16 %v582
        %v1966 = vunpack.c.l.b16 %v583
        %v1967 = vunpack.c.l.b16 %v584
        %v1968 = vunpack.c.l.b16 %v585
        %v1969 = vunpack.c.l.b16 %v586
        %v1970 = vunpack.c.l.b16 %v587
        %v1971 = vunpack.c.l.b16 %v588
        %v1972 = vunpack.c.l.b16 %v589
        %v1973 = vunpack.c.l.b16 %v590
        %v1974 = vunpack.c.l.b16 %v591
        %v1975 = vunpack.c.l.b16 %v592
        %v1976 = vunpack.c.l.b16 %v593
        %v1977 = vunpack.c.l.b16 %v594
        %v1978 = vunpack.c.l.b16 %v595
        %v1979 = vunpack.c.l.b16 %v596
        %v1980 = vunpack.c.l.b16 %v597
        %v1981 = vunpack.c.l.b16 %v598
        %v1982 = vunpack.c.l.b16 %v599
        %v1983 = vunpack.c.l.b16 %v600
        %v1984 = vunpack.c.l.b16 %v601
        %v1985 = vunpack.c.l.b16 %v602
        %v1986 = vunpack.c.l.b16 %v603
        %v1987 = vunpack.c.l.b16 %v604
        %v1988 = vunpack.c.l.b16 %v605
        %v1989 = vunpack.c.l.b16 %v606
        %v1990 = vunpack.c.l.b16 %v607
        %v1991 = vunpack.c.l.b16 %v608
        %v1992 = vunpack.c.l.b16 %v609
        %v1993 = vunpack.c.l.b16 %v610
        %v1994 = vunpack.c.l.b16 %v611
        %v1995 = vunpack.c.l.b16 %v612
        %v1996 = vunpack.c.l.b16 %v613
        %v1997 = vunpack.c.l.b16 %v614
        %v1998 = vunpack.c.l.b16 %v615
        %v1999 = vpack.c.b16 %v1937, %v1936
        %v2000 = vpack.c.b16 %v1939, %v1938
        %v2001 = vpack.c.b16 %v1941, %v1940
        %v2002 = vpack.c.b16 %v1943, %v1942
        %v2003 = vpack.c.b16 %v1945, %v1944
        %v2004 = vpack.c.b16 %v1947, %v1946
        %v2005 = vpack.c.b16 %v1949, %v1948
        %v2006 = vpack.c.b16 %v1951, %v1950
        %v2007 = vpack.c.b16 %v1953, %v1952
        %v2008 = vpack.c.b16 %v1955, %v1954
        %v2009 = vpack.c.b16 %v1957, %v1956
        %v2010 = vpack.c.b16 %v1959, %v1958
        %v2011 = vpack.c.b16 %v1961, %v1960
        %v2012 = vpack.c.b16 %v1963, %v1962
        %v2013 = vpack.c.b16 %v1965, %v1964
        %v2014 = vpack.c.b16 %v1967, %v1966
        %v2015 = vpack.c.b16 %v1969, %v1968
        %v2016 = vpack.c.b16 %v1971, %v1970
        %v2017 = vpack.c.b16 %v1973, %v1972
        %v2018 = vpack.c.b16 %v1975, %v1974
        %v2019 = vpack.c.b16 %v1977, %v1976
        %v2020 = vpack.c.b16 %v1979, %v1978
        %v2021 = vpack.c.b16 %v1981, %v1980
        %v2022 = vpack.c.b16 %v1983, %v1982
        %v2023 = vpack.c.b16 %v1985, %v1984
        %v2024 = vpack.c.b16 %v1987, %v1986
        %v2025 = vpack.c.b16 %v1989, %v1988
        %v2026 = vpack.c.b16 %v1991, %v1990
        %v2027 = vpack.c.b16 %v1993, %v1992
        %v2028 = vpack.c.b16 %v1995, %v1994
        %v2029 = vpack.c.b16 %v1997, %v1996
        %v2030 = vpack.c.b16 %v1998, %v1998
        %vm2062 = vcmask 949248
        %v2064 = vsel %vm2062, %v552, 0
        %vm2066 = vcmask 1041408
        %v2068 = vsel %vm2066, %v2030, 0
        %2070 = vmatprep.subr.bf16.mxu0 0
        %2071 = vmatpush1.bf16.msra.mxu0 %v1999
        %2072 = vmatprep.subr.bf16.mxu0 0
        %2073 = vmatpush1.bf16.msra.mxu0 %v2000
        %2074 = vmatprep.subr.bf16.mxu0 0
        %2075 = vmatpush1.bf16.msra.mxu0 %v2001
        %2076 = vmatprep.subr.bf16.mxu0 0
        %2077 = vmatpush1.bf16.msra.mxu0 %v2002
        %2078 = vmatprep.subr.bf16.mxu0 0
        %2079 = vmatpush1.bf16.msra.mxu0 %v2003
        %2080 = vmatprep.subr.bf16.mxu0 0
        %2081 = vmatpush1.bf16.msra.mxu0 %v2004
        %2082 = vmatprep.subr.bf16.mxu0 0
        %2083 = vmatpush1.bf16.msra.mxu0 %v2005
        %2084 = vmatprep.subr.bf16.mxu0 0
        %2085 = vmatpush1.bf16.msra.mxu0 %v2006
        %2086 = vmatprep.subr.bf16.mxu0 0
        %2087 = vmatpush1.bf16.msra.mxu0 %v2007
        %2088 = vmatprep.subr.bf16.mxu0 0
        %2089 = vmatpush1.bf16.msra.mxu0 %v2008
        %2090 = vmatprep.subr.bf16.mxu0 0
        %2091 = vmatpush1.bf16.msra.mxu0 %v2009
        %2092 = vmatprep.subr.bf16.mxu0 0
        %2093 = vmatpush1.bf16.msra.mxu0 %v2010
        %2094 = vmatprep.subr.bf16.mxu0 0
        %2095 = vmatpush1.bf16.msra.mxu0 %v2011
        %2096 = vmatprep.subr.bf16.mxu0 0
        %2097 = vmatpush1.bf16.msra.mxu0 %v2012
        %2098 = vmatprep.subr.bf16.mxu0 0
        %2099 = vmatpush1.bf16.msra.mxu0 %v2013
        %2100 = vmatprep.subr.bf16.mxu0 0
        %2101 = vmatpush1.bf16.msra.mxu0 %v2014
        %2102 = vmatprep.mubr.bf16.mxu0 %v550
        %2103 = vmatmul.mubr.bf16.gmra.mrb[0].mxu0 %v549
        %v2104 = vpop.f32.mrb[0].mxu0
        %v2105 = vadd.f32 %v1867, %v2104
        %v2106 = vpop.f32.mrb[0].mxu0
        %v2107 = vpop.f32.mrb[0].mxu0
        %v2108 = vadd.f32 %v1870, %v2107
        %v2109 = vpop.f32.mrb[0].mxu0
        %2110 = vdwg.mxu0
        %2111 = vmatprep.subr.bf16.mxu0 0
        %2112 = vmatpush1.bf16.msra.mxu0 %v2015
        %2113 = vmatprep.subr.bf16.mxu0 0
        %2114 = vmatpush1.bf16.msra.mxu0 %v2016
        %2115 = vmatprep.subr.bf16.mxu0 0
        %2116 = vmatpush1.bf16.msra.mxu0 %v2017
        %2117 = vmatprep.subr.bf16.mxu0 0
        %2118 = vmatpush1.bf16.msra.mxu0 %v2018
        %2119 = vmatprep.subr.bf16.mxu0 0
        %2120 = vmatpush1.bf16.msra.mxu0 %v2019
        %2121 = vmatprep.subr.bf16.mxu0 0
        %2122 = vmatpush1.bf16.msra.mxu0 %v2020
        %2123 = vmatprep.subr.bf16.mxu0 0
        %2124 = vmatpush1.bf16.msra.mxu0 %v2021
        %2125 = vmatprep.subr.bf16.mxu0 0
        %2126 = vmatpush1.bf16.msra.mxu0 %v2022
        %2127 = vmatprep.subr.bf16.mxu0 0
        %2128 = vmatpush1.bf16.msra.mxu0 %v2023
        %2129 = vmatprep.subr.bf16.mxu0 0
        %2130 = vmatpush1.bf16.msra.mxu0 %v2024
        %2131 = vmatprep.subr.bf16.mxu0 0
        %2132 = vmatpush1.bf16.msra.mxu0 %v2025
        %2133 = vmatprep.subr.bf16.mxu0 0
        %2134 = vmatpush1.bf16.msra.mxu0 %v2026
        %2135 = vmatprep.subr.bf16.mxu0 0
        %2136 = vmatpush1.bf16.msra.mxu0 %v2027
        %2137 = vmatprep.subr.bf16.mxu0 0
        %2138 = vmatpush1.bf16.msra.mxu0 %v2028
        %2139 = vmatprep.subr.bf16.mxu0 0
        %2140 = vmatpush1.bf16.msra.mxu0 %v2029
        %2141 = vmatprep.subr.bf16.mxu0 0
        %2142 = vmatpush1.bf16.msra.mxu0 %v2068
        %2143 = vmatprep.mubr.bf16.mxu0 %v2064
        %2144 = vmatmul.mubr.bf16.gmra.mrb[0].mxu0 %v551
        %v2145 = vpop.f32.mrb[0].mxu0
        %v2146 = vadd.f32 %v2105, %v2145
        %v2147 = vpop.f32.mrb[0].mxu0
        %v2148 = vpop.f32.mrb[0].mxu0
        %v2149 = vadd.f32 %v2108, %v2148
        %v2150 = vpop.f32.mrb[0].mxu0
        %2151 = vdwg.mxu0
        %v2152 = vld [vmem:[%s7 + $0x1] sm:$0x1]
        %v2153 = vlaneseq
        %v2154 = vshrl.u32 %v2153, 7
        %v2155 = vsub.s32 0, %v2154
        %v2156 = vrot.slane %v2152, %v2155
        %v2157 = vadd.f32 %v2146, %v2156
        %v2158 = vadd.f32 %v2149, %v2156
        %v2159 = vtanh.pop %v2157
        %v2160 = vtanh.pop %v2158
        %v2161 = vpack.c.bf16 %v2160, %v2159
        %v2162 = vld [vmem:[%s6] sm:$0xf]
        %v2163 = vld [vmem:[%s6 + $0x4] sm:$0xf]
        %v2164 = vld [vmem:[%s6 + $0x8] sm:$0xf]
        %v2165 = vld [vmem:[%s6 + $0xc] sm:$0xf]
        %v2166 = vld [vmem:[%s6 + $0x10] sm:$0xf]
        %v2167 = vld [vmem:[%s6 + $0x14] sm:$0xf]
        %v2168 = vld [vmem:[%s6 + $0x18] sm:$0xf]
        %v2169 = vld [vmem:[%s6 + $0x1c] sm:$0xf]
        %v2170 = vld [vmem:[%s7 + $0x2] sm:$0x1]
        %v2171 = vlaneseq
        %v2172 = vshrl.u32 %v2171, 7
        %v2173 = vsub.s32 0, %v2172
        %v2174 = vrot.slane %v2170, %v2173
        %v2183 = vunpack.c.l.b16 %v2162
        %v2184 = vunpack.c.l.b16 %v2163
        %v2185 = vunpack.c.l.b16 %v2164
        %v2186 = vunpack.c.l.b16 %v2165
        %v2187 = vunpack.c.l.b16 %v2166
        %v2188 = vunpack.c.l.b16 %v2167
        %v2189 = vunpack.c.l.b16 %v2168
        %v2190 = vunpack.c.l.b16 %v2169
        %v2191 = vpack.c.b16 %v2184, %v2183
        %v2192 = vpack.c.b16 %v2186, %v2185
        %v2193 = vpack.c.b16 %v2188, %v2187
        %v2194 = vpack.c.b16 %v2190, %v2189
        %vm2199 = vcmask 523264
        %v2201 = vsel %vm2199, %v2161, 0
        %2203 = vmatprep.subr.bf16.mxu0 0
        %2204 = vmatpush1.bf16.msra.mxu0 %v2191
        %2205 = vmatprep.subr.bf16.mxu0 0
        %2206 = vmatpush1.bf16.msra.mxu0 %v2192
        %2207 = vmatprep.subr.bf16.mxu0 0
        %2208 = vmatpush1.bf16.msra.mxu0 %v2193
        %2209 = vmatprep.subr.bf16.mxu0 0
        %2210 = vmatpush1.bf16.msra.mxu0 %v2194
        %2211 = vmatprep.subr.bf16.mxu0 0
        %2212 = vmatpush1.bf16.msra.mxu0 0
        %2213 = vmatprep.subr.bf16.mxu0 0
        %2214 = vmatpush1.bf16.msra.mxu0 0
        %2215 = vmatprep.subr.bf16.mxu0 0
        %2216 = vmatpush1.bf16.msra.mxu0 0
        %2217 = vmatprep.subr.bf16.mxu0 0
        %2218 = vmatpush1.bf16.msra.mxu0 0
        %2219 = vmatprep.subr.bf16.mxu0 0
        %2220 = vmatpush1.bf16.msra.mxu0 0
        %2221 = vmatprep.subr.bf16.mxu0 0
        %2222 = vmatpush1.bf16.msra.mxu0 0
        %2223 = vmatprep.subr.bf16.mxu0 0
        %2224 = vmatpush1.bf16.msra.mxu0 0
        %2225 = vmatprep.subr.bf16.mxu0 0
        %2226 = vmatpush1.bf16.msra.mxu0 0
        %2227 = vmatprep.subr.bf16.mxu0 0
        %2228 = vmatpush1.bf16.msra.mxu0 0
        %2229 = vmatprep.subr.bf16.mxu0 0
        %2230 = vmatpush1.bf16.msra.mxu0 0
        %2231 = vmatprep.subr.bf16.mxu0 0
        %2232 = vmatpush1.bf16.msra.mxu0 0
        %2233 = vmatprep.subr.bf16.mxu0 0
        %2234 = vmatpush1.bf16.msra.mxu0 0
        %2235 = vmatprep.mubr.bf16.mxu0 0
        %2236 = vmatmul.mubr.bf16.gmra.mrb[0].mxu0 %v2201
        %v2237 = vpop.f32.mrb[0].mxu0
        %v2238 = vadd.f32 %v2174, %v2237
        %v2239 = vpop.f32.mrb[0].mxu0
        %v2240 = vpop.f32.mrb[0].mxu0
        %v2241 = vadd.f32 %v2174, %v2240
        %v2242 = vpop.f32.mrb[0].mxu0
        %2243 = vdwg.mxu0
        %2244 = vst [vmem:[%s315] sm:$0xff] %v2238
        %2245 = vst [vmem:[%s315 + $0x8] sm:$0xff] %v2241
        %s2246 = sand.u32 %s208, 1
        %s2247 = scalar_lea.sflag [#allocation3], %s2246
        %s2248 = sand.u32 %s208, 1
        %s2249 = smul.addr %s2248, 16
        %s2250 = scalar_lea.vmem [#allocation2], %s2249
        // Predicated region
        $region53: #{tpu_custom_call.1} parent=51 // pred_check
          %p2251 = pneg %p218
        $region54: #{tpu_custom_call.1} parent=51 // pred_check_branch
          %2253 = sbr.rel (%p2251) target = $region56
        $region55: #{tpu_custom_call.1} parent=51 // pred_region
          %s2254 = smul.u32 2, %s22
          %s2256 = ssub.s32 256, 256
          %2257 = vsyncadd %s2247, %s2256
          %s2258 = smul.addr %s2254, 128
          %s2259 = scalar_lea.hbm %s8, %s2258
          %s2260 = sshll.u32 %s2250, 4
          %s2261 = int_to_ptr.vmem [resolvable:$true] %s2260
          %2266 = dma.vmem_to_hbm [thread:$0]  %s2261, 256, %s2259, %s2247, 128, 128, 8
        $region56: #{tpu_custom_call.1} parent=51 // pred_fallthru
          _
      $region52: #{tpu_custom_call.1} parent=5 // pred_fallthru
        _
      %p2267 = scmp.le.s32.totalorder 2, %s17
      // Predicated region
      $region57: #{tpu_custom_call.1} parent=5 // pred_check
        %p2268 = pneg %p2267
      $region58: #{tpu_custom_call.1} parent=5 // pred_check_branch
        %2270 = sbr.rel (%p2268) target = $region60
      $region59: #{tpu_custom_call.1} parent=5 // pred_region
        %s2271 = ssub.s32 %s17, 2
        // Predicated region
        $region61: #{tpu_custom_call.1} parent=59 // pred_check
          %p2272 = pneg %p224
        $region62: #{tpu_custom_call.1} parent=59 // pred_check_branch
          %2274 = sbr.rel (%p2272) target = $region64
        $region63: #{tpu_custom_call.1} parent=59 // pred_region
          %s2275 = sand.u32 %s209, 1
          %s2276 = scalar_lea.sflag [#allocation3], %s2275
          %s2277 = sand.u32 %s209, 1
          %s2278 = smul.addr %s2277, 16
          %s2279 = scalar_lea.vmem [#allocation2], %s2278
          %2280 = dma.done %s2276, 256
        $region64: #{tpu_custom_call.1} parent=59 // pred_fallthru
          _
      $region60: #{tpu_custom_call.1} parent=5 // pred_fallthru
        _
    $region6: #{tpu_custom_call.1} parent=1 // loop_footer
      %s21 = sadd.s32 1, %s17
    $region7: #{tpu_custom_call.1} parent=1 // loop_footer_branch
      %16 = sbr.rel target = $region3
    $region8: #{tpu_custom_call.1} parent=1 // loop_exit
      _
    %2281 = vsyncpa [#allocation3], 1
    %s2282 = scalar_lea.sflag [#allocation3], 1
    %2283 = vsyncpa %s2282, 1

</llo_original>
